<compile_context>
chip_gen: v7x
topology: tpu7x:2x2x1
jax: 0.10.0
libtpu: 0.0.40
codegen_flags: <defaults>
</compile_context>

<pallas_src>
import math

import jax
import jax.numpy as jnp
from jax import lax
from jax.experimental import pallas as pl
from jax.experimental.pallas import tpu as pltpu

# ----------------------- config (small synthetic shapes) -----------------------
VOCAB = 128        # vocab_size
H = 32             # num_hiddens == norm_shape == key/query/value size == ffn_num_input
FFN = 64           # ffn_num_hiddens
NUM_HEADS = 2
DH = H // NUM_HEADS
NUM_LAYERS = 2
MAX_LEN = 64
HID = 32           # hid_in_features == nsp_in_features
B = 2              # batch
S = 8              # sequence length
ML = 3             # number of masked positions per example
LN_EPS = 1e-5
LANES = 128

_ru8 = lambda n: (n + 7) // 8 * 8

# ---- bf16 weight-slab row layout (all blocks padded to 128 lanes) ----
WL_STRIDE = 160                      # per-layer rows: wqkv 32 + wo 32 + w1 32 + w2 64
WQKV_R, WO_R, W1_R, W2_R = 0, 32, 64, 96
HEAD_R = NUM_LAYERS * WL_STRIDE      # 320
MLM_W1_R = HEAD_R + 0                # (H rows)
MLM_W2_R = HEAD_R + 32               # (H rows, VOCAB lanes)
NSP_W_R = HEAD_R + 64                # (H rows, 2 lanes meaningful)
W_ROWS = HEAD_R + 96                 # 416

# ---- f32 param-slab row layout ----
PL_STRIDE = 8
BQKV_R, BO_R, LN1G_R, LN1B_R, B1_R, B2_R, LN2G_R, LN2B_R = range(8)
PHEAD_R = NUM_LAYERS * PL_STRIDE     # 16
MLM_B1_R = PHEAD_R + 0
MLM_G_R = PHEAD_R + 1
MLM_BETA_R = PHEAD_R + 2
MLM_B2_R = PHEAD_R + 3
NSP_B_R = PHEAD_R + 4
POS_R = PHEAD_R + 5
TOKE_R = 24                          # token_embed rows 24..151 (H lanes used)
SEGE_R = TOKE_R + VOCAB              # 152..153
P_ROWS = 160

# ---- f32 runtime-slab column layout (one row per token) ----
RT_TOK_C, RT_SEG_C, RT_MPOS_C, RT_VL_C = 0, 1, 2, 3
RT_ROWS = B * S                      # 16

# ---- f32 output-slab row layout ----
OUT_ENC_R = 0                        # B*S rows, H lanes
OUT_MLM_R = _ru8(B * S)              # 16: B*ML rows, VOCAB lanes
OUT_NSP_R = OUT_MLM_R + _ru8(B * ML)  # 24: B rows, 2 lanes
OUT_ROWS = OUT_NSP_R + _ru8(B)        # 32


def full_spec(shape):
    """BlockSpec covering the entire array (block == full shape), grid=(1,)."""
    nd = len(shape)
    return pl.BlockSpec(shape, lambda i, _nd=nd: (0,) * _nd)


# ------------------------------ fused BERT kernel -------------------------------
def bert_kernel(rt_ref, w_ref, p_ref, out_ref):
    f32, bf16 = jnp.float32, jnp.bfloat16
    scale = 1.0 / math.sqrt(DH)

    def mm(a, w):  # bf16 MXU operands, f32 accumulation (w already bf16)
        return jnp.dot(a.astype(bf16), w, preferred_element_type=f32)

    def bmm(eq, a, c):  # batched matmul over a single leading batch dim
        return jnp.einsum(eq, a.astype(bf16), c.astype(bf16),
                          preferred_element_type=f32)

    def layer_norm(z, g, beta):  # two-pass stats, f32
        mean = jnp.mean(z, axis=-1, keepdims=True)
        d = z - mean
        var = jnp.mean(d * d, axis=-1, keepdims=True)
        return d * lax.rsqrt(var + LN_EPS) * g + beta

    out_ref[...] = jnp.zeros_like(out_ref)            # defined bits in unused rows/lanes

    rt = rt_ref[...]                                   # (B*S, 128) f32

    # ---- in-kernel embedding lookup (one-hot matmul / broadcast select) ----
    tok_col = rt[:, RT_TOK_C:RT_TOK_C + 1]                                  # (B*S, 1)
    seg_col = rt[:, RT_SEG_C:RT_SEG_C + 1]
    vocab_iota = lax.broadcasted_iota(jnp.int32, (1, VOCAB), 1).astype(f32)
    tok_onehot = (tok_col == vocab_iota).astype(f32)                        # (B*S, VOCAB)
    tok_tab = p_ref[TOKE_R:TOKE_R + VOCAB, 0:H]                             # (VOCAB, H)
    x = jnp.dot(tok_onehot, tok_tab, preferred_element_type=f32)            # (B*S, H)
    seg0 = p_ref[SEGE_R:SEGE_R + 1, 0:H]
    seg1 = p_ref[SEGE_R + 1:SEGE_R + 2, 0:H]
    x = x + jnp.where(seg_col == 0.0, seg0, seg1)
    # reference quirk: position[:, X.shape[1], :] (a single row) added everywhere
    x = x + p_ref[POS_R:POS_R + 1, 0:H]

    # ---- key-validity mask, built once with one vectorized compare ----
    vl_col = rt[0:B, RT_VL_C:RT_VL_C + 1]                                   # (B, 1)
    key_iota = lax.broadcasted_iota(jnp.int32, (1, S), 1).astype(f32)
    keymask = (key_iota < vl_col).reshape(B, 1, S)                          # (B,1,S) bool

    for l in range(NUM_LAYERS):  # fully unrolled; all weights stay VMEM-resident
        wb = l * WL_STRIDE
        pb = l * PL_STRIDE

        # fused QKV projection: single (B*S,H) x (H,3H) MXU pass
        qkv = (mm(x, w_ref[wb + WQKV_R:wb + WQKV_R + H, 0:3 * H])
               + p_ref[pb + BQKV_R:pb + BQKV_R + 1, 0:3 * H])               # (B*S, 3H)

        # per-head attention (NUM_HEADS=2, unrolled): contiguous static slices,
        # per-head row-half of Wo instead of a ctx lane-concat.
        y1 = jnp.zeros((B * S, H), f32)
        for hd in range(NUM_HEADS):
            qh = qkv[:, hd * DH:(hd + 1) * DH].reshape(B, S, DH)
            kh = qkv[:, H + hd * DH:H + (hd + 1) * DH].reshape(B, S, DH)
            vh = qkv[:, 2 * H + hd * DH:2 * H + (hd + 1) * DH].reshape(B, S, DH)
            s_raw = bmm('bqd,bkd->bqk', qh, kh) * scale                     # (B,S,S)
            s_ = jnp.where(keymask, s_raw, -1000000.0)                      # "set", like ref
            m_ = jnp.max(s_, axis=-1, keepdims=True)
            e_ = jnp.exp(s_ - m_)
            p_ = e_ * pl.reciprocal(jnp.sum(e_, axis=-1, keepdims=True), approx=True)
            ctx = bmm('bqk,bkd->bqd', p_, vh).reshape(B * S, DH)            # (B*S, DH)
            wo_half = w_ref[wb + WO_R + hd * DH:wb + WO_R + (hd + 1) * DH, 0:H]
            y1 = y1 + mm(ctx, wo_half)
        y1 = y1 + p_ref[pb + BO_R:pb + BO_R + 1, 0:H]

        # AddNorm1
        y2 = layer_norm(y1 + x,
                        p_ref[pb + LN1G_R:pb + LN1G_R + 1, 0:H],
                        p_ref[pb + LN1B_R:pb + LN1B_R + 1, 0:H])

        # position-wise FFN + AddNorm2
        hmid = jnp.maximum(mm(y2, w_ref[wb + W1_R:wb + W1_R + H, 0:FFN])
                           + p_ref[pb + B1_R:pb + B1_R + 1, 0:FFN], 0.0)
        y3 = (mm(hmid, w_ref[wb + W2_R:wb + W2_R + FFN, 0:H])
              + p_ref[pb + B2_R:pb + B2_R + 1, 0:H])
        x = layer_norm(y3 + y2,
                       p_ref[pb + LN2G_R:pb + LN2G_R + 1, 0:H],
                       p_ref[pb + LN2B_R:pb + LN2B_R + 1, 0:H])

    # ---- encoder output, written directly as (B*S, H) rows ----
    out_ref[OUT_ENC_R:OUT_ENC_R + B * S, 0:H] = x

    # ---- NSP head on the [CLS] token: the two linears are fused offline ----
    cls = x.reshape(B, S, H)[:, 0, :]                                       # (B, H)
    nsp = mm(cls, w_ref[NSP_W_R:NSP_W_R + H, :]) + p_ref[NSP_B_R:NSP_B_R + 1, :]
    out_ref[OUT_NSP_R:OUT_NSP_R + B, :] = nsp                               # (B, 128)

    # ---- MLM head: masked-position gather via one broadcasted compare + matmul ----
    mpos_col = rt[0:B * ML, RT_MPOS_C:RT_MPOS_C + 1]                        # (B*ML, 1)
    flat_iota = lax.broadcasted_iota(jnp.int32, (1, B * S), 1).astype(f32)
    sel = (mpos_col == flat_iota).astype(f32)                               # (B*ML, B*S)
    new_x = jnp.dot(sel, x, preferred_element_type=f32)                     # exact gather

    h1 = jnp.maximum(mm(new_x, w_ref[MLM_W1_R:MLM_W1_R + H, 0:H])
                     + p_ref[MLM_B1_R:MLM_B1_R + 1, 0:H], 0.0)
    ln = layer_norm(h1,
                    p_ref[MLM_G_R:MLM_G_R + 1, 0:H],
                    p_ref[MLM_BETA_R:MLM_BETA_R + 1, 0:H])
    mlm = (mm(ln, w_ref[MLM_W2_R:MLM_W2_R + H, 0:VOCAB])
           + p_ref[MLM_B2_R:MLM_B2_R + 1, 0:VOCAB])
    out_ref[OUT_MLM_R:OUT_MLM_R + B * ML, :] = mlm                          # (B*ML, VOCAB)


# --------------------------------- parameters ----------------------------------
def init_raw_params(key):
    keys = iter(jax.random.split(key, 64))

    def nrm(shape, scale=0.05):
        return scale * jax.random.normal(next(keys), shape, dtype=jnp.float32)

    L = NUM_LAYERS
    return {
        'token_embed': nrm((VOCAB, H)),
        'segment_embed': nrm((2, H)),
        'position': nrm((1, MAX_LEN, H)),
        'wqkv': nrm((L, H, 3 * H)), 'bqkv': nrm((L, 3 * H)),
        'wo': nrm((L, H, H)), 'bo': nrm((L, H)),
        'ln1_g': jnp.ones((L, H), jnp.float32), 'ln1_b': jnp.zeros((L, H), jnp.float32),
        'w1': nrm((L, H, FFN)), 'b1': nrm((L, FFN)),
        'w2': nrm((L, FFN, H)), 'b2': nrm((L, H)),
        'ln2_g': jnp.ones((L, H), jnp.float32), 'ln2_b': jnp.zeros((L, H), jnp.float32),
        'mlm_w1': nrm((H, H)), 'mlm_b1': nrm((H,)),
        'mlm_g': jnp.ones((H,), jnp.float32), 'mlm_beta': jnp.zeros((H,), jnp.float32),
        'mlm_w2': nrm((H, VOCAB)), 'mlm_b2': nrm((VOCAB,)),
        'hid_w': nrm((H, HID)), 'hid_b': nrm((HID,)),
        'nsp_w': nrm((HID, 2)), 'nsp_b': nrm((2,)),
    }


def pack_params(raw):
    """Pack all parameters into one bf16 weight slab and one f32 param slab."""
    w = jnp.zeros((W_ROWS, LANES), jnp.float32)
    for l in range(NUM_LAYERS):
        wb = l * WL_STRIDE
        w = w.at[wb + WQKV_R:wb + WQKV_R + H, :3 * H].set(raw['wqkv'][l])
        w = w.at[wb + WO_R:wb + WO_R + H, :H].set(raw['wo'][l])
        w = w.at[wb + W1_R:wb + W1_R + H, :FFN].set(raw['w1'][l])
        w = w.at[wb + W2_R:wb + W2_R + FFN, :H].set(raw['w2'][l])
    w = w.at[MLM_W1_R:MLM_W1_R + H, :H].set(raw['mlm_w1'])
    w = w.at[MLM_W2_R:MLM_W2_R + H, :VOCAB].set(raw['mlm_w2'])
    # NSP: fold hiddens-linear and logits-linear (no activation between them in ref)
    nsp_w_fused = raw['hid_w'] @ raw['nsp_w']                     # (H, 2)
    nsp_b_fused = raw['hid_b'] @ raw['nsp_w'] + raw['nsp_b']      # (2,)
    w = w.at[NSP_W_R:NSP_W_R + H, :2].set(nsp_w_fused)
    wslab = w.astype(jnp.bfloat16)

    p = jnp.zeros((P_ROWS, LANES), jnp.float32)
    for l in range(NUM_LAYERS):
        pb = l * PL_STRIDE
        p = p.at[pb + BQKV_R, :3 * H].set(raw['bqkv'][l])
        p = p.at[pb + BO_R, :H].set(raw['bo'][l])
        p = p.at[pb + LN1G_R, :H].set(raw['ln1_g'][l])
        p = p.at[pb + LN1B_R, :H].set(raw['ln1_b'][l])
        p = p.at[pb + B1_R, :FFN].set(raw['b1'][l])
        p = p.at[pb + B2_R, :H].set(raw['b2'][l])
        p = p.at[pb + LN2G_R, :H].set(raw['ln2_g'][l])
        p = p.at[pb + LN2B_R, :H].set(raw['ln2_b'][l])
    p = p.at[MLM_B1_R, :H].set(raw['mlm_b1'])
    p = p.at[MLM_G_R, :H].set(raw['mlm_g'])
    p = p.at[MLM_BETA_R, :H].set(raw['mlm_beta'])
    p = p.at[MLM_B2_R, :VOCAB].set(raw['mlm_b2'])
    p = p.at[NSP_B_R, :2].set(nsp_b_fused)
    p = p.at[POS_R, :H].set(raw['position'][0, S, :])   # ref quirk: single row index S
    p = p.at[TOKE_R:TOKE_R + VOCAB, :H].set(raw['token_embed'])
    p = p.at[SEGE_R:SEGE_R + 2, :H].set(raw['segment_embed'])
    return wslab, p


# ---------------------------------- forward ------------------------------------
@jax.jit
def bert_forward(wslab, pslab, tokens, segments, valid_lens, pre_position):
    b, s = tokens.shape
    ml = pre_position.shape[1]

    # runtime slab: one tiny VMEM input carrying tokens / segments / flat masked
    # positions / valid_lens as exact small integers in f32 columns.
    flat_pos = (jnp.repeat(jnp.arange(b, dtype=jnp.int32), ml) * s
                + pre_position.reshape(-1).astype(jnp.int32))
    rt = jnp.zeros((RT_ROWS, LANES), jnp.float32)
    rt = rt.at[:, RT_TOK_C].set(tokens.reshape(-1).astype(jnp.float32))
    rt = rt.at[:, RT_SEG_C].set(segments.reshape(-1).astype(jnp.float32))
    rt = rt.at[:b * ml, RT_MPOS_C].set(flat_pos.astype(jnp.float32))
    rt = rt.at[:b, RT_VL_C].set(valid_lens.reshape(-1).astype(jnp.float32))

    out = pl.pallas_call(
        bert_kernel,
        out_shape=jax.ShapeDtypeStruct((OUT_ROWS, LANES), jnp.float32),
        grid=(1,),
        in_specs=[full_spec((RT_ROWS, LANES)),
                  full_spec((W_ROWS, LANES)),
                  full_spec((P_ROWS, LANES))],
        out_specs=full_spec((OUT_ROWS, LANES)),
        compiler_params=pltpu.CompilerParams(dimension_semantics=("arbitrary",)),
    )(rt, wslab, pslab)

    encode_x = out[OUT_ENC_R:OUT_ENC_R + b * s, :H].reshape(b, s, H)
    mlm_y_hat = out[OUT_MLM_R:OUT_MLM_R + b * ml, :VOCAB].reshape(b, ml, VOCAB)
    nsp_y_hat = out[OUT_NSP_R:OUT_NSP_R + b, :2]
    return encode_x, mlm_y_hat, nsp_y_hat


# ------------------------------------ main --------------------------------------
if __name__ == "__main__":
    key = jax.random.PRNGKey(0)
    pkey, dkey = jax.random.split(key)
    raw = init_raw_params(pkey)
    wslab, pslab = pack_params(raw)

    k1, k2 = jax.random.split(dkey)
    tokens = jax.random.randint(k1, (B, S), 0, VOCAB, dtype=jnp.int32)
    segments = jnp.concatenate(
        [jnp.zeros((B, S // 2), jnp.int32), jnp.ones((B, S // 2), jnp.int32)], axis=1)
    valid_lens = jnp.array([S, S - 2], dtype=jnp.int32)
    pre_position = jax.random.randint(k2, (B, ML), 0, S, dtype=jnp.int32)

    encode_x, mlm_y_hat, nsp_y_hat = bert_forward(
        wslab, pslab, tokens, segments, valid_lens, pre_position)
    jax.block_until_ready((encode_x, mlm_y_hat, nsp_y_hat))

    assert encode_x.shape == (B, S, H)
    assert mlm_y_hat.shape == (B, ML, VOCAB)
    assert nsp_y_hat.shape == (B, 2)
    assert bool(jnp.all(jnp.isfinite(encode_x)))
    assert bool(jnp.all(jnp.isfinite(mlm_y_hat)))
    assert bool(jnp.all(jnp.isfinite(nsp_y_hat)))
    print("KERNEL_OK")
</pallas_src>

<mosaic_0001>
module attributes {stable_mosaic.version = 11 : i64} {
  func.func @bert_kernel(%arg0: i32, %arg1: memref<16x128xf32, #tpu.memory_space<vmem>>, %arg2: memref<416x128xbf16, #tpu.memory_space<vmem>>, %arg3: memref<160x128xf32, #tpu.memory_space<vmem>>, %arg4: memref<32x128xf32, #tpu.memory_space<vmem>>) attributes {dimension_semantics = [#tpu.dimension_semantics<arbitrary>], iteration_bounds = array<i64: 1>, scalar_prefetch = 0 : i64, scratch_operands = 0 : i64, tpu.core_type = #tpu.core_type<tc>, window_params = [{pipeline_mode = #tpu.pipeline_mode<synchronous>, transform_indices = @transform_0, window_bounds = array<i64: 16, 128>}, {pipeline_mode = #tpu.pipeline_mode<synchronous>, transform_indices = @transform_1, window_bounds = array<i64: 416, 128>}, {pipeline_mode = #tpu.pipeline_mode<synchronous>, transform_indices = @transform_2, window_bounds = array<i64: 160, 128>}, {pipeline_mode = #tpu.pipeline_mode<synchronous>, transform_indices = @transform_3, window_bounds = array<i64: 32, 128>}]} {
    %cst = arith.constant 0.000000e+00 : f32
    %0 = vector.broadcast %cst : f32 to vector<32x128xf32>
    %c0 = arith.constant 0 : index
    %c0_0 = arith.constant 0 : index
    %1 = vector.load %arg4[%c0, %c0_0] : memref<32x128xf32, #tpu.memory_space<vmem>>, vector<32x128xf32>
    tpu.vector_store %arg4[%c0, %c0_0], %0 {strides = array<i32>} : memref<32x128xf32, #tpu.memory_space<vmem>>, vector<32x128xf32>,
    %c0_1 = arith.constant 0 : index
    %c0_2 = arith.constant 0 : index
    %2 = vector.load %arg1[%c0_1, %c0_2] : memref<16x128xf32, #tpu.memory_space<vmem>>, vector<16x128xf32>
    %3 = vector.extract_strided_slice %2 {offsets = [0, 0], sizes = [16, 1], strides = [1, 1]} : vector<16x128xf32> to vector<16x1xf32>
    %4 = vector.extract_strided_slice %2 {offsets = [0, 1], sizes = [16, 1], strides = [1, 1]} : vector<16x128xf32> to vector<16x1xf32>
    %5 = tpu.iota {dimensions = array<i32: 1>} : vector<1x128xi32>
    %6 = arith.sitofp %5 : vector<1x128xi32> to vector<1x128xf32>
    %7 = vector.broadcast %3 : vector<16x1xf32> to vector<16x128xf32>
    %8 = vector.broadcast %6 : vector<1x128xf32> to vector<16x128xf32>
    %9 = arith.cmpf oeq, %7, %8 : vector<16x128xf32>
    %10 = arith.extui %9 : vector<16x128xi1> to vector<16x128xi32>
    %11 = arith.sitofp %10 : vector<16x128xi32> to vector<16x128xf32>
    %c24 = arith.constant 24 : index
    %c0_3 = arith.constant 0 : index
    %12 = vector.load %arg3[%c24, %c0_3] : memref<160x128xf32, #tpu.memory_space<vmem>>, vector<128x32xf32>
    %cst_4 = arith.constant dense<0.000000e+00> : vector<16x32xf32>
    %13 = tpu.matmul %11, %12, %cst_4 {dimension_numbers = #tpu.dot_dimension_numbers<[1], [0], [0], [1], [0, 0, 1, 1], [], []>} : vector<16x128xf32>, vector<128x32xf32>, vector<16x32xf32> -> vector<16x32xf32>
    %c152 = arith.constant 152 : index
    %c0_5 = arith.constant 0 : index
    %14 = vector.load %arg3[%c152, %c0_5] : memref<160x128xf32, #tpu.memory_space<vmem>>, vector<1x32xf32>
    %c153 = arith.constant 153 : index
    %c0_6 = arith.constant 0 : index
    %15 = vector.load %arg3[%c153, %c0_6] : memref<160x128xf32, #tpu.memory_space<vmem>>, vector<1x32xf32>
    %cst_7 = arith.constant 0.000000e+00 : f32
    %16 = vector.broadcast %cst_7 : f32 to vector<16x1xf32>
    %17 = arith.cmpf oeq, %4, %16 : vector<16x1xf32>
    %18 = vector.shape_cast %17 : vector<16x1xi1> to vector<16x1xi1>
    %19 = vector.broadcast %18 : vector<16x1xi1> to vector<16x32xi1>
    %20 = vector.shape_cast %14 : vector<1x32xf32> to vector<1x32xf32>
    %21 = vector.broadcast %20 : vector<1x32xf32> to vector<16x32xf32>
    %22 = vector.shape_cast %15 : vector<1x32xf32> to vector<1x32xf32>
    %23 = vector.broadcast %22 : vector<1x32xf32> to vector<16x32xf32>
    %24 = arith.select %19, %21, %23 : vector<16x32xi1>, vector<16x32xf32>
    %25 = arith.addf %13, %24 : vector<16x32xf32>
    %c21 = arith.constant 21 : index
    %c0_8 = arith.constant 0 : index
    %26 = vector.load %arg3[%c21, %c0_8] : memref<160x128xf32, #tpu.memory_space<vmem>>, vector<1x32xf32>
    %27 = vector.broadcast %26 : vector<1x32xf32> to vector<16x32xf32>
    %28 = arith.addf %25, %27 : vector<16x32xf32>
    %29 = vector.extract_strided_slice %2 {offsets = [0, 3], sizes = [2, 1], strides = [1, 1]} : vector<16x128xf32> to vector<2x1xf32>
    %30 = tpu.iota {dimensions = array<i32: 1>} : vector<1x8xi32>
    %31 = arith.sitofp %30 : vector<1x8xi32> to vector<1x8xf32>
    %32 = vector.broadcast %31 : vector<1x8xf32> to vector<2x8xf32>
    %33 = vector.broadcast %29 : vector<2x1xf32> to vector<2x8xf32>
    %34 = arith.cmpf olt, %32, %33 : vector<2x8xf32>
    %35 = vector.shape_cast %34 : vector<2x8xi1> to vector<2x1x8xi1>
    %c0_9 = arith.constant 0 : index
    %c0_10 = arith.constant 0 : index
    %36 = vector.load %arg2[%c0_9, %c0_10] : memref<416x128xbf16, #tpu.memory_space<vmem>>, vector<32x96xbf16>
    %37 = arith.truncf %28 : vector<16x32xf32> to vector<16x32xbf16>
    %cst_11 = arith.constant dense<0.000000e+00> : vector<16x96xf32>
    %38 = tpu.matmul %37, %36, %cst_11 {dimension_numbers = #tpu.dot_dimension_numbers<[1], [0], [0], [1], [0, 0, 1, 1], [], []>} : vector<16x32xbf16>, vector<32x96xbf16>, vector<16x96xf32> -> vector<16x96xf32>
    %c0_12 = arith.constant 0 : index
    %c0_13 = arith.constant 0 : index
    %39 = vector.load %arg3[%c0_12, %c0_13] : memref<160x128xf32, #tpu.memory_space<vmem>>, vector<1x96xf32>
    %40 = vector.broadcast %39 : vector<1x96xf32> to vector<16x96xf32>
    %41 = arith.addf %38, %40 : vector<16x96xf32>
    %cst_14 = arith.constant 0.000000e+00 : f32
    %42 = vector.broadcast %cst_14 : f32 to vector<16x32xf32>
    %43 = vector.extract_strided_slice %41 {offsets = [0, 0], sizes = [16, 16], strides = [1, 1]} : vector<16x96xf32> to vector<16x16xf32>
    %44 = vector.shape_cast %43 : vector<16x16xf32> to vector<2x8x16xf32>
    %45 = vector.extract_strided_slice %41 {offsets = [0, 32], sizes = [16, 16], strides = [1, 1]} : vector<16x96xf32> to vector<16x16xf32>
    %46 = vector.shape_cast %45 : vector<16x16xf32> to vector<2x8x16xf32>
    %47 = vector.extract_strided_slice %41 {offsets = [0, 64], sizes = [16, 16], strides = [1, 1]} : vector<16x96xf32> to vector<16x16xf32>
    %48 = vector.shape_cast %47 : vector<16x16xf32> to vector<2x8x16xf32>
    %49 = arith.truncf %44 : vector<2x8x16xf32> to vector<2x8x16xbf16>
    %50 = arith.truncf %46 : vector<2x8x16xf32> to vector<2x8x16xbf16>
    "tpu.trace_start"() <{level = 10 : i32, message = "bqd,bkd->bqk"}> : () -> ()
    %cst_15 = arith.constant dense<0.000000e+00> : vector<2x8x8xf32>
    %51 = tpu.matmul %49, %50, %cst_15 {dimension_numbers = #tpu.dot_dimension_numbers<[2], [2], [1], [1], [0, 0, 0, 1, 1, 1], [0], [0]>} : vector<2x8x16xbf16>, vector<2x8x16xbf16>, vector<2x8x8xf32> -> vector<2x8x8xf32>
    "tpu.trace_stop"() : () -> ()
    %cst_16 = arith.constant 2.500000e-01 : f32
    %52 = vector.broadcast %cst_16 : f32 to vector<2x8x8xf32>
    %53 = arith.mulf %51, %52 : vector<2x8x8xf32>
    %cst_17 = arith.constant -1.000000e+06 : f32
    %54 = vector.shape_cast %35 : vector<2x1x8xi1> to vector<2x1x8xi1>
    %55 = vector.broadcast %54 : vector<2x1x8xi1> to vector<2x8x8xi1>
    %56 = vector.broadcast %cst_17 : f32 to vector<2x8x8xf32>
    %57 = arith.select %55, %53, %56 : vector<2x8x8xi1>, vector<2x8x8xf32>
    %cst_18 = arith.constant dense<0xFF800000> : vector<2x8xf32>
    %58 = vector.multi_reduction <maximumf>, %57, %cst_18 [2] : vector<2x8x8xf32> to vector<2x8xf32>
    %59 = vector.shape_cast %58 : vector<2x8xf32> to vector<2x8x1xf32>
    %60 = vector.broadcast %59 : vector<2x8x1xf32> to vector<2x8x8xf32>
    %61 = arith.subf %57, %60 : vector<2x8x8xf32>
    %62 = math.exp %61 : vector<2x8x8xf32>
    %cst_19 = arith.constant dense<0.000000e+00> : vector<2x8xf32>
    %63 = vector.multi_reduction <add>, %62, %cst_19 [2] : vector<2x8x8xf32> to vector<2x8xf32>
    %64 = vector.shape_cast %63 : vector<2x8xf32> to vector<2x8x1xf32>
    %65 = tpu.reciprocal %64 {approx = true} : vector<2x8x1xf32> -> vector<2x8x1xf32>
    %66 = vector.broadcast %65 : vector<2x8x1xf32> to vector<2x8x8xf32>
    %67 = arith.mulf %62, %66 : vector<2x8x8xf32>
    %68 = arith.truncf %67 : vector<2x8x8xf32> to vector<2x8x8xbf16>
    %69 = arith.truncf %48 : vector<2x8x16xf32> to vector<2x8x16xbf16>
    "tpu.trace_start"() <{level = 10 : i32, message = "bqk,bkd->bqd"}> : () -> ()
    %cst_20 = arith.constant dense<0.000000e+00> : vector<2x8x16xf32>
    %70 = tpu.matmul %68, %69, %cst_20 {dimension_numbers = #tpu.dot_dimension_numbers<[2], [1], [1], [2], [0, 0, 0, 1, 1, 2], [0], [0]>} : vector<2x8x8xbf16>, vector<2x8x16xbf16>, vector<2x8x16xf32> -> vector<2x8x16xf32>
    "tpu.trace_stop"() : () -> ()
    %71 = vector.shape_cast %70 : vector<2x8x16xf32> to vector<16x16xf32>
    %c32 = arith.constant 32 : index
    %c0_21 = arith.constant 0 : index
    %72 = vector.load %arg2[%c32, %c0_21] : memref<416x128xbf16, #tpu.memory_space<vmem>>, vector<16x32xbf16>
    %73 = arith.truncf %71 : vector<16x16xf32> to vector<16x16xbf16>
    %cst_22 = arith.constant dense<0.000000e+00> : vector<16x32xf32>
    %74 = tpu.matmul %73, %72, %cst_22 {dimension_numbers = #tpu.dot_dimension_numbers<[1], [0], [0], [1], [0, 0, 1, 1], [], []>} : vector<16x16xbf16>, vector<16x32xbf16>, vector<16x32xf32> -> vector<16x32xf32>
    %75 = arith.addf %42, %74 : vector<16x32xf32>
    %76 = vector.extract_strided_slice %41 {offsets = [0, 16], sizes = [16, 16], strides = [1, 1]} : vector<16x96xf32> to vector<16x16xf32>
    %77 = vector.shape_cast %76 : vector<16x16xf32> to vector<2x8x16xf32>
    %78 = vector.extract_strided_slice %41 {offsets = [0, 48], sizes = [16, 16], strides = [1, 1]} : vector<16x96xf32> to vector<16x16xf32>
    %79 = vector.shape_cast %78 : vector<16x16xf32> to vector<2x8x16xf32>
    %80 = vector.extract_strided_slice %41 {offsets = [0, 80], sizes = [16, 16], strides = [1, 1]} : vector<16x96xf32> to vector<16x16xf32>
    %81 = vector.shape_cast %80 : vector<16x16xf32> to vector<2x8x16xf32>
    %82 = arith.truncf %77 : vector<2x8x16xf32> to vector<2x8x16xbf16>
    %83 = arith.truncf %79 : vector<2x8x16xf32> to vector<2x8x16xbf16>
    "tpu.trace_start"() <{level = 10 : i32, message = "bqd,bkd->bqk"}> : () -> ()
    %cst_23 = arith.constant dense<0.000000e+00> : vector<2x8x8xf32>
    %84 = tpu.matmul %82, %83, %cst_23 {dimension_numbers = #tpu.dot_dimension_numbers<[2], [2], [1], [1], [0, 0, 0, 1, 1, 1], [0], [0]>} : vector<2x8x16xbf16>, vector<2x8x16xbf16>, vector<2x8x8xf32> -> vector<2x8x8xf32>
    "tpu.trace_stop"() : () -> ()
    %cst_24 = arith.constant 2.500000e-01 : f32
    %85 = vector.broadcast %cst_24 : f32 to vector<2x8x8xf32>
    %86 = arith.mulf %84, %85 : vector<2x8x8xf32>
    %cst_25 = arith.constant -1.000000e+06 : f32
    %87 = vector.shape_cast %35 : vector<2x1x8xi1> to vector<2x1x8xi1>
    %88 = vector.broadcast %87 : vector<2x1x8xi1> to vector<2x8x8xi1>
    %89 = vector.broadcast %cst_25 : f32 to vector<2x8x8xf32>
    %90 = arith.select %88, %86, %89 : vector<2x8x8xi1>, vector<2x8x8xf32>
    %cst_26 = arith.constant dense<0xFF800000> : vector<2x8xf32>
    %91 = vector.multi_reduction <maximumf>, %90, %cst_26 [2] : vector<2x8x8xf32> to vector<2x8xf32>
    %92 = vector.shape_cast %91 : vector<2x8xf32> to vector<2x8x1xf32>
    %93 = vector.broadcast %92 : vector<2x8x1xf32> to vector<2x8x8xf32>
    %94 = arith.subf %90, %93 : vector<2x8x8xf32>
    %95 = math.exp %94 : vector<2x8x8xf32>
    %cst_27 = arith.constant dense<0.000000e+00> : vector<2x8xf32>
    %96 = vector.multi_reduction <add>, %95, %cst_27 [2] : vector<2x8x8xf32> to vector<2x8xf32>
    %97 = vector.shape_cast %96 : vector<2x8xf32> to vector<2x8x1xf32>
    %98 = tpu.reciprocal %97 {approx = true} : vector<2x8x1xf32> -> vector<2x8x1xf32>
    %99 = vector.broadcast %98 : vector<2x8x1xf32> to vector<2x8x8xf32>
    %100 = arith.mulf %95, %99 : vector<2x8x8xf32>
    %101 = arith.truncf %100 : vector<2x8x8xf32> to vector<2x8x8xbf16>
    %102 = arith.truncf %81 : vector<2x8x16xf32> to vector<2x8x16xbf16>
    "tpu.trace_start"() <{level = 10 : i32, message = "bqk,bkd->bqd"}> : () -> ()
    %cst_28 = arith.constant dense<0.000000e+00> : vector<2x8x16xf32>
    %103 = tpu.matmul %101, %102, %cst_28 {dimension_numbers = #tpu.dot_dimension_numbers<[2], [1], [1], [2], [0, 0, 0, 1, 1, 2], [0], [0]>} : vector<2x8x8xbf16>, vector<2x8x16xbf16>, vector<2x8x16xf32> -> vector<2x8x16xf32>
    "tpu.trace_stop"() : () -> ()
    %104 = vector.shape_cast %103 : vector<2x8x16xf32> to vector<16x16xf32>
    %c48 = arith.constant 48 : index
    %c0_29 = arith.constant 0 : index
    %105 = vector.load %arg2[%c48, %c0_29] : memref<416x128xbf16, #tpu.memory_space<vmem>>, vector<16x32xbf16>
    %106 = arith.truncf %104 : vector<16x16xf32> to vector<16x16xbf16>
    %cst_30 = arith.constant dense<0.000000e+00> : vector<16x32xf32>
    %107 = tpu.matmul %106, %105, %cst_30 {dimension_numbers = #tpu.dot_dimension_numbers<[1], [0], [0], [1], [0, 0, 1, 1], [], []>} : vector<16x16xbf16>, vector<16x32xbf16>, vector<16x32xf32> -> vector<16x32xf32>
    %108 = arith.addf %75, %107 : vector<16x32xf32>
    %c1 = arith.constant 1 : index
    %c0_31 = arith.constant 0 : index
    %109 = vector.load %arg3[%c1, %c0_31] : memref<160x128xf32, #tpu.memory_space<vmem>>, vector<1x32xf32>
    %110 = vector.broadcast %109 : vector<1x32xf32> to vector<16x32xf32>
    %111 = arith.addf %108, %110 : vector<16x32xf32>
    %112 = arith.addf %111, %28 : vector<16x32xf32>
    %c2 = arith.constant 2 : index
    %c0_32 = arith.constant 0 : index
    %113 = vector.load %arg3[%c2, %c0_32] : memref<160x128xf32, #tpu.memory_space<vmem>>, vector<1x32xf32>
    %c3 = arith.constant 3 : index
    %c0_33 = arith.constant 0 : index
    %114 = vector.load %arg3[%c3, %c0_33] : memref<160x128xf32, #tpu.memory_space<vmem>>, vector<1x32xf32>
    %cst_34 = arith.constant dense<0.000000e+00> : vector<16xf32>
    %115 = vector.multi_reduction <add>, %112, %cst_34 [1] : vector<16x32xf32> to vector<16xf32>
    %116 = vector.shape_cast %115 : vector<16xf32> to vector<16x1xf32>
    %cst_35 = arith.constant 3.200000e+01 : f32
    %117 = vector.broadcast %cst_35 : f32 to vector<16x1xf32>
    %118 = arith.divf %116, %117 : vector<16x1xf32>
    %119 = vector.broadcast %118 : vector<16x1xf32> to vector<16x32xf32>
    %120 = arith.subf %112, %119 : vector<16x32xf32>
    %121 = arith.mulf %120, %120 : vector<16x32xf32>
    %cst_36 = arith.constant dense<0.000000e+00> : vector<16xf32>
    %122 = vector.multi_reduction <add>, %121, %cst_36 [1] : vector<16x32xf32> to vector<16xf32>
    %123 = vector.shape_cast %122 : vector<16xf32> to vector<16x1xf32>
    %cst_37 = arith.constant 3.200000e+01 : f32
    %124 = vector.broadcast %cst_37 : f32 to vector<16x1xf32>
    %125 = arith.divf %123, %124 : vector<16x1xf32>
    %cst_38 = arith.constant 9.99999974E-6 : f32
    %126 = vector.broadcast %cst_38 : f32 to vector<16x1xf32>
    %127 = arith.addf %125, %126 : vector<16x1xf32>
    %128 = math.rsqrt %127 : vector<16x1xf32>
    %129 = vector.broadcast %128 : vector<16x1xf32> to vector<16x32xf32>
    %130 = arith.mulf %120, %129 : vector<16x32xf32>
    %131 = vector.broadcast %113 : vector<1x32xf32> to vector<16x32xf32>
    %132 = arith.mulf %130, %131 : vector<16x32xf32>
    %133 = vector.broadcast %114 : vector<1x32xf32> to vector<16x32xf32>
    %134 = arith.addf %132, %133 : vector<16x32xf32>
    %c64 = arith.constant 64 : index
    %c0_39 = arith.constant 0 : index
    %135 = vector.load %arg2[%c64, %c0_39] : memref<416x128xbf16, #tpu.memory_space<vmem>>, vector<32x64xbf16>
    %136 = arith.truncf %134 : vector<16x32xf32> to vector<16x32xbf16>
    %cst_40 = arith.constant dense<0.000000e+00> : vector<16x64xf32>
    %137 = tpu.matmul %136, %135, %cst_40 {dimension_numbers = #tpu.dot_dimension_numbers<[1], [0], [0], [1], [0, 0, 1, 1], [], []>} : vector<16x32xbf16>, vector<32x64xbf16>, vector<16x64xf32> -> vector<16x64xf32>
    %c4 = arith.constant 4 : index
    %c0_41 = arith.constant 0 : index
    %138 = vector.load %arg3[%c4, %c0_41] : memref<160x128xf32, #tpu.memory_space<vmem>>, vector<1x64xf32>
    %139 = vector.broadcast %138 : vector<1x64xf32> to vector<16x64xf32>
    %140 = arith.addf %137, %139 : vector<16x64xf32>
    %cst_42 = arith.constant 0.000000e+00 : f32
    %141 = vector.broadcast %cst_42 : f32 to vector<16x64xf32>
    %142 = arith.maximumf %140, %141 : vector<16x64xf32>
    %c96 = arith.constant 96 : index
    %c0_43 = arith.constant 0 : index
    %143 = vector.load %arg2[%c96, %c0_43] : memref<416x128xbf16, #tpu.memory_space<vmem>>, vector<64x32xbf16>
    %144 = arith.truncf %142 : vector<16x64xf32> to vector<16x64xbf16>
    %cst_44 = arith.constant dense<0.000000e+00> : vector<16x32xf32>
    %145 = tpu.matmul %144, %143, %cst_44 {dimension_numbers = #tpu.dot_dimension_numbers<[1], [0], [0], [1], [0, 0, 1, 1], [], []>} : vector<16x64xbf16>, vector<64x32xbf16>, vector<16x32xf32> -> vector<16x32xf32>
    %c5 = arith.constant 5 : index
    %c0_45 = arith.constant 0 : index
    %146 = vector.load %arg3[%c5, %c0_45] : memref<160x128xf32, #tpu.memory_space<vmem>>, vector<1x32xf32>
    %147 = vector.broadcast %146 : vector<1x32xf32> to vector<16x32xf32>
    %148 = arith.addf %145, %147 : vector<16x32xf32>
    %149 = arith.addf %148, %134 : vector<16x32xf32>
    %c6 = arith.constant 6 : index
    %c0_46 = arith.constant 0 : index
    %150 = vector.load %arg3[%c6, %c0_46] : memref<160x128xf32, #tpu.memory_space<vmem>>, vector<1x32xf32>
    %c7 = arith.constant 7 : index
    %c0_47 = arith.constant 0 : index
    %151 = vector.load %arg3[%c7, %c0_47] : memref<160x128xf32, #tpu.memory_space<vmem>>, vector<1x32xf32>
    %cst_48 = arith.constant dense<0.000000e+00> : vector<16xf32>
    %152 = vector.multi_reduction <add>, %149, %cst_48 [1] : vector<16x32xf32> to vector<16xf32>
    %153 = vector.shape_cast %152 : vector<16xf32> to vector<16x1xf32>
    %cst_49 = arith.constant 3.200000e+01 : f32
    %154 = vector.broadcast %cst_49 : f32 to vector<16x1xf32>
    %155 = arith.divf %153, %154 : vector<16x1xf32>
    %156 = vector.broadcast %155 : vector<16x1xf32> to vector<16x32xf32>
    %157 = arith.subf %149, %156 : vector<16x32xf32>
    %158 = arith.mulf %157, %157 : vector<16x32xf32>
    %cst_50 = arith.constant dense<0.000000e+00> : vector<16xf32>
    %159 = vector.multi_reduction <add>, %158, %cst_50 [1] : vector<16x32xf32> to vector<16xf32>
    %160 = vector.shape_cast %159 : vector<16xf32> to vector<16x1xf32>
    %cst_51 = arith.constant 3.200000e+01 : f32
    %161 = vector.broadcast %cst_51 : f32 to vector<16x1xf32>
    %162 = arith.divf %160, %161 : vector<16x1xf32>
    %cst_52 = arith.constant 9.99999974E-6 : f32
    %163 = vector.broadcast %cst_52 : f32 to vector<16x1xf32>
    %164 = arith.addf %162, %163 : vector<16x1xf32>
    %165 = math.rsqrt %164 : vector<16x1xf32>
    %166 = vector.broadcast %165 : vector<16x1xf32> to vector<16x32xf32>
    %167 = arith.mulf %157, %166 : vector<16x32xf32>
    %168 = vector.broadcast %150 : vector<1x32xf32> to vector<16x32xf32>
    %169 = arith.mulf %167, %168 : vector<16x32xf32>
    %170 = vector.broadcast %151 : vector<1x32xf32> to vector<16x32xf32>
    %171 = arith.addf %169, %170 : vector<16x32xf32>
    %c160 = arith.constant 160 : index
    %c0_53 = arith.constant 0 : index
    %172 = vector.load %arg2[%c160, %c0_53] : memref<416x128xbf16, #tpu.memory_space<vmem>>, vector<32x96xbf16>
    %173 = arith.truncf %171 : vector<16x32xf32> to vector<16x32xbf16>
    %cst_54 = arith.constant dense<0.000000e+00> : vector<16x96xf32>
    %174 = tpu.matmul %173, %172, %cst_54 {dimension_numbers = #tpu.dot_dimension_numbers<[1], [0], [0], [1], [0, 0, 1, 1], [], []>} : vector<16x32xbf16>, vector<32x96xbf16>, vector<16x96xf32> -> vector<16x96xf32>
    %c8 = arith.constant 8 : index
    %c0_55 = arith.constant 0 : index
    %175 = vector.load %arg3[%c8, %c0_55] : memref<160x128xf32, #tpu.memory_space<vmem>>, vector<1x96xf32>
    %176 = vector.broadcast %175 : vector<1x96xf32> to vector<16x96xf32>
    %177 = arith.addf %174, %176 : vector<16x96xf32>
    %cst_56 = arith.constant 0.000000e+00 : f32
    %178 = vector.broadcast %cst_56 : f32 to vector<16x32xf32>
    %179 = vector.extract_strided_slice %177 {offsets = [0, 0], sizes = [16, 16], strides = [1, 1]} : vector<16x96xf32> to vector<16x16xf32>
    %180 = vector.shape_cast %179 : vector<16x16xf32> to vector<2x8x16xf32>
    %181 = vector.extract_strided_slice %177 {offsets = [0, 32], sizes = [16, 16], strides = [1, 1]} : vector<16x96xf32> to vector<16x16xf32>
    %182 = vector.shape_cast %181 : vector<16x16xf32> to vector<2x8x16xf32>
    %183 = vector.extract_strided_slice %177 {offsets = [0, 64], sizes = [16, 16], strides = [1, 1]} : vector<16x96xf32> to vector<16x16xf32>
    %184 = vector.shape_cast %183 : vector<16x16xf32> to vector<2x8x16xf32>
    %185 = arith.truncf %180 : vector<2x8x16xf32> to vector<2x8x16xbf16>
    %186 = arith.truncf %182 : vector<2x8x16xf32> to vector<2x8x16xbf16>
    "tpu.trace_start"() <{level = 10 : i32, message = "bqd,bkd->bqk"}> : () -> ()
    %cst_57 = arith.constant dense<0.000000e+00> : vector<2x8x8xf32>
    %187 = tpu.matmul %185, %186, %cst_57 {dimension_numbers = #tpu.dot_dimension_numbers<[2], [2], [1], [1], [0, 0, 0, 1, 1, 1], [0], [0]>} : vector<2x8x16xbf16>, vector<2x8x16xbf16>, vector<2x8x8xf32> -> vector<2x8x8xf32>
    "tpu.trace_stop"() : () -> ()
    %cst_58 = arith.constant 2.500000e-01 : f32
    %188 = vector.broadcast %cst_58 : f32 to vector<2x8x8xf32>
    %189 = arith.mulf %187, %188 : vector<2x8x8xf32>
    %cst_59 = arith.constant -1.000000e+06 : f32
    %190 = vector.shape_cast %35 : vector<2x1x8xi1> to vector<2x1x8xi1>
    %191 = vector.broadcast %190 : vector<2x1x8xi1> to vector<2x8x8xi1>
    %192 = vector.broadcast %cst_59 : f32 to vector<2x8x8xf32>
    %193 = arith.select %191, %189, %192 : vector<2x8x8xi1>, vector<2x8x8xf32>
    %cst_60 = arith.constant dense<0xFF800000> : vector<2x8xf32>
    %194 = vector.multi_reduction <maximumf>, %193, %cst_60 [2] : vector<2x8x8xf32> to vector<2x8xf32>
    %195 = vector.shape_cast %194 : vector<2x8xf32> to vector<2x8x1xf32>
    %196 = vector.broadcast %195 : vector<2x8x1xf32> to vector<2x8x8xf32>
    %197 = arith.subf %193, %196 : vector<2x8x8xf32>
    %198 = math.exp %197 : vector<2x8x8xf32>
    %cst_61 = arith.constant dense<0.000000e+00> : vector<2x8xf32>
    %199 = vector.multi_reduction <add>, %198, %cst_61 [2] : vector<2x8x8xf32> to vector<2x8xf32>
    %200 = vector.shape_cast %199 : vector<2x8xf32> to vector<2x8x1xf32>
    %201 = tpu.reciprocal %200 {approx = true} : vector<2x8x1xf32> -> vector<2x8x1xf32>
    %202 = vector.broadcast %201 : vector<2x8x1xf32> to vector<2x8x8xf32>
    %203 = arith.mulf %198, %202 : vector<2x8x8xf32>
    %204 = arith.truncf %203 : vector<2x8x8xf32> to vector<2x8x8xbf16>
    %205 = arith.truncf %184 : vector<2x8x16xf32> to vector<2x8x16xbf16>
    "tpu.trace_start"() <{level = 10 : i32, message = "bqk,bkd->bqd"}> : () -> ()
    %cst_62 = arith.constant dense<0.000000e+00> : vector<2x8x16xf32>
    %206 = tpu.matmul %204, %205, %cst_62 {dimension_numbers = #tpu.dot_dimension_numbers<[2], [1], [1], [2], [0, 0, 0, 1, 1, 2], [0], [0]>} : vector<2x8x8xbf16>, vector<2x8x16xbf16>, vector<2x8x16xf32> -> vector<2x8x16xf32>
    "tpu.trace_stop"() : () -> ()
    %207 = vector.shape_cast %206 : vector<2x8x16xf32> to vector<16x16xf32>
    %c192 = arith.constant 192 : index
    %c0_63 = arith.constant 0 : index
    %208 = vector.load %arg2[%c192, %c0_63] : memref<416x128xbf16, #tpu.memory_space<vmem>>, vector<16x32xbf16>
    %209 = arith.truncf %207 : vector<16x16xf32> to vector<16x16xbf16>
    %cst_64 = arith.constant dense<0.000000e+00> : vector<16x32xf32>
    %210 = tpu.matmul %209, %208, %cst_64 {dimension_numbers = #tpu.dot_dimension_numbers<[1], [0], [0], [1], [0, 0, 1, 1], [], []>} : vector<16x16xbf16>, vector<16x32xbf16>, vector<16x32xf32> -> vector<16x32xf32>
    %211 = arith.addf %178, %210 : vector<16x32xf32>
    %212 = vector.extract_strided_slice %177 {offsets = [0, 16], sizes = [16, 16], strides = [1, 1]} : vector<16x96xf32> to vector<16x16xf32>
    %213 = vector.shape_cast %212 : vector<16x16xf32> to vector<2x8x16xf32>
    %214 = vector.extract_strided_slice %177 {offsets = [0, 48], sizes = [16, 16], strides = [1, 1]} : vector<16x96xf32> to vector<16x16xf32>
    %215 = vector.shape_cast %214 : vector<16x16xf32> to vector<2x8x16xf32>
    %216 = vector.extract_strided_slice %177 {offsets = [0, 80], sizes = [16, 16], strides = [1, 1]} : vector<16x96xf32> to vector<16x16xf32>
    %217 = vector.shape_cast %216 : vector<16x16xf32> to vector<2x8x16xf32>
    %218 = arith.truncf %213 : vector<2x8x16xf32> to vector<2x8x16xbf16>
    %219 = arith.truncf %215 : vector<2x8x16xf32> to vector<2x8x16xbf16>
    "tpu.trace_start"() <{level = 10 : i32, message = "bqd,bkd->bqk"}> : () -> ()
    %cst_65 = arith.constant dense<0.000000e+00> : vector<2x8x8xf32>
    %220 = tpu.matmul %218, %219, %cst_65 {dimension_numbers = #tpu.dot_dimension_numbers<[2], [2], [1], [1], [0, 0, 0, 1, 1, 1], [0], [0]>} : vector<2x8x16xbf16>, vector<2x8x16xbf16>, vector<2x8x8xf32> -> vector<2x8x8xf32>
    "tpu.trace_stop"() : () -> ()
    %cst_66 = arith.constant 2.500000e-01 : f32
    %221 = vector.broadcast %cst_66 : f32 to vector<2x8x8xf32>
    %222 = arith.mulf %220, %221 : vector<2x8x8xf32>
    %cst_67 = arith.constant -1.000000e+06 : f32
    %223 = vector.shape_cast %35 : vector<2x1x8xi1> to vector<2x1x8xi1>
    %224 = vector.broadcast %223 : vector<2x1x8xi1> to vector<2x8x8xi1>
    %225 = vector.broadcast %cst_67 : f32 to vector<2x8x8xf32>
    %226 = arith.select %224, %222, %225 : vector<2x8x8xi1>, vector<2x8x8xf32>
    %cst_68 = arith.constant dense<0xFF800000> : vector<2x8xf32>
    %227 = vector.multi_reduction <maximumf>, %226, %cst_68 [2] : vector<2x8x8xf32> to vector<2x8xf32>
    %228 = vector.shape_cast %227 : vector<2x8xf32> to vector<2x8x1xf32>
    %229 = vector.broadcast %228 : vector<2x8x1xf32> to vector<2x8x8xf32>
    %230 = arith.subf %226, %229 : vector<2x8x8xf32>
    %231 = math.exp %230 : vector<2x8x8xf32>
    %cst_69 = arith.constant dense<0.000000e+00> : vector<2x8xf32>
    %232 = vector.multi_reduction <add>, %231, %cst_69 [2] : vector<2x8x8xf32> to vector<2x8xf32>
    %233 = vector.shape_cast %232 : vector<2x8xf32> to vector<2x8x1xf32>
    %234 = tpu.reciprocal %233 {approx = true} : vector<2x8x1xf32> -> vector<2x8x1xf32>
    %235 = vector.broadcast %234 : vector<2x8x1xf32> to vector<2x8x8xf32>
    %236 = arith.mulf %231, %235 : vector<2x8x8xf32>
    %237 = arith.truncf %236 : vector<2x8x8xf32> to vector<2x8x8xbf16>
    %238 = arith.truncf %217 : vector<2x8x16xf32> to vector<2x8x16xbf16>
    "tpu.trace_start"() <{level = 10 : i32, message = "bqk,bkd->bqd"}> : () -> ()
    %cst_70 = arith.constant dense<0.000000e+00> : vector<2x8x16xf32>
    %239 = tpu.matmul %237, %238, %cst_70 {dimension_numbers = #tpu.dot_dimension_numbers<[2], [1], [1], [2], [0, 0, 0, 1, 1, 2], [0], [0]>} : vector<2x8x8xbf16>, vector<2x8x16xbf16>, vector<2x8x16xf32> -> vector<2x8x16xf32>
    "tpu.trace_stop"() : () -> ()
    %240 = vector.shape_cast %239 : vector<2x8x16xf32> to vector<16x16xf32>
    %c208 = arith.constant 208 : index
    %c0_71 = arith.constant 0 : index
    %241 = vector.load %arg2[%c208, %c0_71] : memref<416x128xbf16, #tpu.memory_space<vmem>>, vector<16x32xbf16>
    %242 = arith.truncf %240 : vector<16x16xf32> to vector<16x16xbf16>
    %cst_72 = arith.constant dense<0.000000e+00> : vector<16x32xf32>
    %243 = tpu.matmul %242, %241, %cst_72 {dimension_numbers = #tpu.dot_dimension_numbers<[1], [0], [0], [1], [0, 0, 1, 1], [], []>} : vector<16x16xbf16>, vector<16x32xbf16>, vector<16x32xf32> -> vector<16x32xf32>
    %244 = arith.addf %211, %243 : vector<16x32xf32>
    %c9 = arith.constant 9 : index
    %c0_73 = arith.constant 0 : index
    %245 = vector.load %arg3[%c9, %c0_73] : memref<160x128xf32, #tpu.memory_space<vmem>>, vector<1x32xf32>
    %246 = vector.broadcast %245 : vector<1x32xf32> to vector<16x32xf32>
    %247 = arith.addf %244, %246 : vector<16x32xf32>
    %248 = arith.addf %247, %171 : vector<16x32xf32>
    %c10 = arith.constant 10 : index
    %c0_74 = arith.constant 0 : index
    %249 = vector.load %arg3[%c10, %c0_74] : memref<160x128xf32, #tpu.memory_space<vmem>>, vector<1x32xf32>
    %c11 = arith.constant 11 : index
    %c0_75 = arith.constant 0 : index
    %250 = vector.load %arg3[%c11, %c0_75] : memref<160x128xf32, #tpu.memory_space<vmem>>, vector<1x32xf32>
    %cst_76 = arith.constant dense<0.000000e+00> : vector<16xf32>
    %251 = vector.multi_reduction <add>, %248, %cst_76 [1] : vector<16x32xf32> to vector<16xf32>
    %252 = vector.shape_cast %251 : vector<16xf32> to vector<16x1xf32>
    %cst_77 = arith.constant 3.200000e+01 : f32
    %253 = vector.broadcast %cst_77 : f32 to vector<16x1xf32>
    %254 = arith.divf %252, %253 : vector<16x1xf32>
    %255 = vector.broadcast %254 : vector<16x1xf32> to vector<16x32xf32>
    %256 = arith.subf %248, %255 : vector<16x32xf32>
    %257 = arith.mulf %256, %256 : vector<16x32xf32>
    %cst_78 = arith.constant dense<0.000000e+00> : vector<16xf32>
    %258 = vector.multi_reduction <add>, %257, %cst_78 [1] : vector<16x32xf32> to vector<16xf32>
    %259 = vector.shape_cast %258 : vector<16xf32> to vector<16x1xf32>
    %cst_79 = arith.constant 3.200000e+01 : f32
    %260 = vector.broadcast %cst_79 : f32 to vector<16x1xf32>
    %261 = arith.divf %259, %260 : vector<16x1xf32>
    %cst_80 = arith.constant 9.99999974E-6 : f32
    %262 = vector.broadcast %cst_80 : f32 to vector<16x1xf32>
    %263 = arith.addf %261, %262 : vector<16x1xf32>
    %264 = math.rsqrt %263 : vector<16x1xf32>
    %265 = vector.broadcast %264 : vector<16x1xf32> to vector<16x32xf32>
    %266 = arith.mulf %256, %265 : vector<16x32xf32>
    %267 = vector.broadcast %249 : vector<1x32xf32> to vector<16x32xf32>
    %268 = arith.mulf %266, %267 : vector<16x32xf32>
    %269 = vector.broadcast %250 : vector<1x32xf32> to vector<16x32xf32>
    %270 = arith.addf %268, %269 : vector<16x32xf32>
    %c224 = arith.constant 224 : index
    %c0_81 = arith.constant 0 : index
    %271 = vector.load %arg2[%c224, %c0_81] : memref<416x128xbf16, #tpu.memory_space<vmem>>, vector<32x64xbf16>
    %272 = arith.truncf %270 : vector<16x32xf32> to vector<16x32xbf16>
    %cst_82 = arith.constant dense<0.000000e+00> : vector<16x64xf32>
    %273 = tpu.matmul %272, %271, %cst_82 {dimension_numbers = #tpu.dot_dimension_numbers<[1], [0], [0], [1], [0, 0, 1, 1], [], []>} : vector<16x32xbf16>, vector<32x64xbf16>, vector<16x64xf32> -> vector<16x64xf32>
    %c12 = arith.constant 12 : index
    %c0_83 = arith.constant 0 : index
    %274 = vector.load %arg3[%c12, %c0_83] : memref<160x128xf32, #tpu.memory_space<vmem>>, vector<1x64xf32>
    %275 = vector.broadcast %274 : vector<1x64xf32> to vector<16x64xf32>
    %276 = arith.addf %273, %275 : vector<16x64xf32>
    %cst_84 = arith.constant 0.000000e+00 : f32
    %277 = vector.broadcast %cst_84 : f32 to vector<16x64xf32>
    %278 = arith.maximumf %276, %277 : vector<16x64xf32>
    %c256 = arith.constant 256 : index
    %c0_85 = arith.constant 0 : index
    %279 = vector.load %arg2[%c256, %c0_85] : memref<416x128xbf16, #tpu.memory_space<vmem>>, vector<64x32xbf16>
    %280 = arith.truncf %278 : vector<16x64xf32> to vector<16x64xbf16>
    %cst_86 = arith.constant dense<0.000000e+00> : vector<16x32xf32>
    %281 = tpu.matmul %280, %279, %cst_86 {dimension_numbers = #tpu.dot_dimension_numbers<[1], [0], [0], [1], [0, 0, 1, 1], [], []>} : vector<16x64xbf16>, vector<64x32xbf16>, vector<16x32xf32> -> vector<16x32xf32>
    %c13 = arith.constant 13 : index
    %c0_87 = arith.constant 0 : index
    %282 = vector.load %arg3[%c13, %c0_87] : memref<160x128xf32, #tpu.memory_space<vmem>>, vector<1x32xf32>
    %283 = vector.broadcast %282 : vector<1x32xf32> to vector<16x32xf32>
    %284 = arith.addf %281, %283 : vector<16x32xf32>
    %285 = arith.addf %284, %270 : vector<16x32xf32>
    %c14 = arith.constant 14 : index
    %c0_88 = arith.constant 0 : index
    %286 = vector.load %arg3[%c14, %c0_88] : memref<160x128xf32, #tpu.memory_space<vmem>>, vector<1x32xf32>
    %c15 = arith.constant 15 : index
    %c0_89 = arith.constant 0 : index
    %287 = vector.load %arg3[%c15, %c0_89] : memref<160x128xf32, #tpu.memory_space<vmem>>, vector<1x32xf32>
    %cst_90 = arith.constant dense<0.000000e+00> : vector<16xf32>
    %288 = vector.multi_reduction <add>, %285, %cst_90 [1] : vector<16x32xf32> to vector<16xf32>
    %289 = vector.shape_cast %288 : vector<16xf32> to vector<16x1xf32>
    %cst_91 = arith.constant 3.200000e+01 : f32
    %290 = vector.broadcast %cst_91 : f32 to vector<16x1xf32>
    %291 = arith.divf %289, %290 : vector<16x1xf32>
    %292 = vector.broadcast %291 : vector<16x1xf32> to vector<16x32xf32>
    %293 = arith.subf %285, %292 : vector<16x32xf32>
    %294 = arith.mulf %293, %293 : vector<16x32xf32>
    %cst_92 = arith.constant dense<0.000000e+00> : vector<16xf32>
    %295 = vector.multi_reduction <add>, %294, %cst_92 [1] : vector<16x32xf32> to vector<16xf32>
    %296 = vector.shape_cast %295 : vector<16xf32> to vector<16x1xf32>
    %cst_93 = arith.constant 3.200000e+01 : f32
    %297 = vector.broadcast %cst_93 : f32 to vector<16x1xf32>
    %298 = arith.divf %296, %297 : vector<16x1xf32>
    %cst_94 = arith.constant 9.99999974E-6 : f32
    %299 = vector.broadcast %cst_94 : f32 to vector<16x1xf32>
    %300 = arith.addf %298, %299 : vector<16x1xf32>
    %301 = math.rsqrt %300 : vector<16x1xf32>
    %302 = vector.broadcast %301 : vector<16x1xf32> to vector<16x32xf32>
    %303 = arith.mulf %293, %302 : vector<16x32xf32>
    %304 = vector.broadcast %286 : vector<1x32xf32> to vector<16x32xf32>
    %305 = arith.mulf %303, %304 : vector<16x32xf32>
    %306 = vector.broadcast %287 : vector<1x32xf32> to vector<16x32xf32>
    %307 = arith.addf %305, %306 : vector<16x32xf32>
    %c0_95 = arith.constant 0 : index
    %c0_96 = arith.constant 0 : index
    %308 = vector.load %arg4[%c0_95, %c0_96] : memref<32x128xf32, #tpu.memory_space<vmem>>, vector<16x32xf32>
    tpu.vector_store %arg4[%c0_95, %c0_96], %307 {strides = array<i32>} : memref<32x128xf32, #tpu.memory_space<vmem>>, vector<16x32xf32>,
    %309 = vector.shape_cast %307 : vector<16x32xf32> to vector<2x8x32xf32>
    %310 = vector.extract_strided_slice %309 {offsets = [0, 0, 0], sizes = [2, 1, 32], strides = [1, 1, 1]} : vector<2x8x32xf32> to vector<2x1x32xf32>
    %311 = vector.shape_cast %310 : vector<2x1x32xf32> to vector<2x32xf32>
    %c384 = arith.constant 384 : index
    %c0_97 = arith.constant 0 : index
    %312 = vector.load %arg2[%c384, %c0_97] : memref<416x128xbf16, #tpu.memory_space<vmem>>, vector<32x128xbf16>
    %313 = arith.truncf %311 : vector<2x32xf32> to vector<2x32xbf16>
    %cst_98 = arith.constant dense<0.000000e+00> : vector<2x128xf32>
    %314 = tpu.matmul %313, %312, %cst_98 {dimension_numbers = #tpu.dot_dimension_numbers<[1], [0], [0], [1], [0, 0, 1, 1], [], []>} : vector<2x32xbf16>, vector<32x128xbf16>, vector<2x128xf32> -> vector<2x128xf32>
    %c20 = arith.constant 20 : index
    %c0_99 = arith.constant 0 : index
    %315 = vector.load %arg3[%c20, %c0_99] : memref<160x128xf32, #tpu.memory_space<vmem>>, vector<1x128xf32>
    %316 = vector.broadcast %315 : vector<1x128xf32> to vector<2x128xf32>
    %317 = arith.addf %314, %316 : vector<2x128xf32>
    %c24_100 = arith.constant 24 : index
    %c0_101 = arith.constant 0 : index
    %318 = vector.load %arg4[%c24_100, %c0_101] : memref<32x128xf32, #tpu.memory_space<vmem>>, vector<2x128xf32>
    tpu.vector_store %arg4[%c24_100, %c0_101], %317 {strides = array<i32>} : memref<32x128xf32, #tpu.memory_space<vmem>>, vector<2x128xf32>,
    %319 = vector.extract_strided_slice %2 {offsets = [0, 2], sizes = [6, 1], strides = [1, 1]} : vector<16x128xf32> to vector<6x1xf32>
    %320 = tpu.iota {dimensions = array<i32: 1>} : vector<1x16xi32>
    %321 = arith.sitofp %320 : vector<1x16xi32> to vector<1x16xf32>
    %322 = vector.broadcast %319 : vector<6x1xf32> to vector<6x16xf32>
    %323 = vector.broadcast %321 : vector<1x16xf32> to vector<6x16xf32>
    %324 = arith.cmpf oeq, %322, %323 : vector<6x16xf32>
    %325 = arith.extui %324 : vector<6x16xi1> to vector<6x16xi32>
    %326 = arith.sitofp %325 : vector<6x16xi32> to vector<6x16xf32>
    %cst_102 = arith.constant dense<0.000000e+00> : vector<6x32xf32>
    %327 = tpu.matmul %326, %307, %cst_102 {dimension_numbers = #tpu.dot_dimension_numbers<[1], [0], [0], [1], [0, 0, 1, 1], [], []>} : vector<6x16xf32>, vector<16x32xf32>, vector<6x32xf32> -> vector<6x32xf32>
    %c320 = arith.constant 320 : index
    %c0_103 = arith.constant 0 : index
    %328 = vector.load %arg2[%c320, %c0_103] : memref<416x128xbf16, #tpu.memory_space<vmem>>, vector<32x32xbf16>
    %329 = arith.truncf %327 : vector<6x32xf32> to vector<6x32xbf16>
    %cst_104 = arith.constant dense<0.000000e+00> : vector<6x32xf32>
    %330 = tpu.matmul %329, %328, %cst_104 {dimension_numbers = #tpu.dot_dimension_numbers<[1], [0], [0], [1], [0, 0, 1, 1], [], []>} : vector<6x32xbf16>, vector<32x32xbf16>, vector<6x32xf32> -> vector<6x32xf32>
    %c16 = arith.constant 16 : index
    %c0_105 = arith.constant 0 : index
    %331 = vector.load %arg3[%c16, %c0_105] : memref<160x128xf32, #tpu.memory_space<vmem>>, vector<1x32xf32>
    %332 = vector.broadcast %331 : vector<1x32xf32> to vector<6x32xf32>
    %333 = arith.addf %330, %332 : vector<6x32xf32>
    %cst_106 = arith.constant 0.000000e+00 : f32
    %334 = vector.broadcast %cst_106 : f32 to vector<6x32xf32>
    %335 = arith.maximumf %333, %334 : vector<6x32xf32>
    %c17 = arith.constant 17 : index
    %c0_107 = arith.constant 0 : index
    %336 = vector.load %arg3[%c17, %c0_107] : memref<160x128xf32, #tpu.memory_space<vmem>>, vector<1x32xf32>
    %c18 = arith.constant 18 : index
    %c0_108 = arith.constant 0 : index
    %337 = vector.load %arg3[%c18, %c0_108] : memref<160x128xf32, #tpu.memory_space<vmem>>, vector<1x32xf32>
    %cst_109 = arith.constant dense<0.000000e+00> : vector<6xf32>
    %338 = vector.multi_reduction <add>, %335, %cst_109 [1] : vector<6x32xf32> to vector<6xf32>
    %339 = vector.shape_cast %338 : vector<6xf32> to vector<6x1xf32>
    %cst_110 = arith.constant 3.200000e+01 : f32
    %340 = vector.broadcast %cst_110 : f32 to vector<6x1xf32>
    %341 = arith.divf %339, %340 : vector<6x1xf32>
    %342 = vector.broadcast %341 : vector<6x1xf32> to vector<6x32xf32>
    %343 = arith.subf %335, %342 : vector<6x32xf32>
    %344 = arith.mulf %343, %343 : vector<6x32xf32>
    %cst_111 = arith.constant dense<0.000000e+00> : vector<6xf32>
    %345 = vector.multi_reduction <add>, %344, %cst_111 [1] : vector<6x32xf32> to vector<6xf32>
    %346 = vector.shape_cast %345 : vector<6xf32> to vector<6x1xf32>
    %cst_112 = arith.constant 3.200000e+01 : f32
    %347 = vector.broadcast %cst_112 : f32 to vector<6x1xf32>
    %348 = arith.divf %346, %347 : vector<6x1xf32>
    %cst_113 = arith.constant 9.99999974E-6 : f32
    %349 = vector.broadcast %cst_113 : f32 to vector<6x1xf32>
    %350 = arith.addf %348, %349 : vector<6x1xf32>
    %351 = math.rsqrt %350 : vector<6x1xf32>
    %352 = vector.broadcast %351 : vector<6x1xf32> to vector<6x32xf32>
    %353 = arith.mulf %343, %352 : vector<6x32xf32>
    %354 = vector.broadcast %336 : vector<1x32xf32> to vector<6x32xf32>
    %355 = arith.mulf %353, %354 : vector<6x32xf32>
    %356 = vector.broadcast %337 : vector<1x32xf32> to vector<6x32xf32>
    %357 = arith.addf %355, %356 : vector<6x32xf32>
    %c352 = arith.constant 352 : index
    %c0_114 = arith.constant 0 : index
    %358 = vector.load %arg2[%c352, %c0_114] : memref<416x128xbf16, #tpu.memory_space<vmem>>, vector<32x128xbf16>
    %359 = arith.truncf %357 : vector<6x32xf32> to vector<6x32xbf16>
    %cst_115 = arith.constant dense<0.000000e+00> : vector<6x128xf32>
    %360 = tpu.matmul %359, %358, %cst_115 {dimension_numbers = #tpu.dot_dimension_numbers<[1], [0], [0], [1], [0, 0, 1, 1], [], []>} : vector<6x32xbf16>, vector<32x128xbf16>, vector<6x128xf32> -> vector<6x128xf32>
    %c19 = arith.constant 19 : index
    %c0_116 = arith.constant 0 : index
    %361 = vector.load %arg3[%c19, %c0_116] : memref<160x128xf32, #tpu.memory_space<vmem>>, vector<1x128xf32>
    %362 = vector.broadcast %361 : vector<1x128xf32> to vector<6x128xf32>
    %363 = arith.addf %360, %362 : vector<6x128xf32>
    %c16_117 = arith.constant 16 : index
    %c0_118 = arith.constant 0 : index
    %364 = vector.load %arg4[%c16_117, %c0_118] : memref<32x128xf32, #tpu.memory_space<vmem>>, vector<6x128xf32>
    tpu.vector_store %arg4[%c16_117, %c0_118], %363 {strides = array<i32>} : memref<32x128xf32, #tpu.memory_space<vmem>>, vector<6x128xf32>,
    return
  }
  func.func @transform_0(%arg0: i32) -> (i32, i32) {
    %c0_i32 = arith.constant 0 : i32
    %c0_i32_0 = arith.constant 0 : i32
    %c0_i32_1 = arith.constant 0 : i32
    return %c0_i32, %c0_i32_0 : i32, i32
  }
  func.func @transform_1(%arg0: i32) -> (i32, i32) {
    %c0_i32 = arith.constant 0 : i32
    %c0_i32_0 = arith.constant 0 : i32
    %c0_i32_1 = arith.constant 0 : i32
    return %c0_i32, %c0_i32_0 : i32, i32
  }
  func.func @transform_2(%arg0: i32) -> (i32, i32) {
    %c0_i32 = arith.constant 0 : i32
    %c0_i32_0 = arith.constant 0 : i32
    %c0_i32_1 = arith.constant 0 : i32
    return %c0_i32, %c0_i32_0 : i32, i32
  }
  func.func @transform_3(%arg0: i32) -> (i32, i32) {
    %c0_i32 = arith.constant 0 : i32
    %c0_i32_0 = arith.constant 0 : i32
    %c0_i32_1 = arith.constant 0 : i32
    return %c0_i32, %c0_i32_0 : i32, i32
  }
}

</mosaic_0001>

<llo_original>
// kernel: bert_forward.1
$region0: #{bert_forward.1}
  #allocation0 [shape = 'u32[]', space=smem, size = 0x4, offset = 0x4, fixed_abs, tag = 'smem constant byte address 0x4 - core index']
  #allocation1 [shape = 'u32[144,128]{1,0:T(1,128)}', space=vmem, size = 0x12000, scoped, tag = 'internal scratch']
  %s0 = inlined_call_operand.vmem [shape: f32[16,128], index: 0, kind: input, shape index: {}]
  %s1 = inlined_call_operand.vmem [shape: bf16[416,128], index: 1, kind: input, shape index: {}]
  %s2 = inlined_call_operand.hbm [shape: f32[160,128], index: 2, kind: input, shape index: {}]
  %s3 = inlined_call_operand.vmem [shape: f32[32,128], index: 3, kind: output, shape index: {}]
  %s4 = sld [smem:[#allocation0]]
  $region26: #{bert_forward.1} parent=0
    _
  %s6 = ssub.s32 1, %s4
  %s7 = scalar_select 0, %s6, %s4
  $region1: #{bert_forward.1} parent=0
    #allocation2 [shape = 'u8[81920]{0}', space=vmem, size = 0x14000, scoped, tag = 'input window, operand 2, single buffered']
    #allocation3 [shape = 's32[1]{0}', space=sflag, size = 0x4, scoped, tag = 'scoped memory for bert_forward.1']
    %8 = vsyncpa [#allocation3], 0
    // Predicated region
    $region2: #{bert_forward.1} parent=1 // pred_check
      _
    $region3: #{bert_forward.1} parent=1 // pred_check_branch
      %10 = sbr.rel (0) target = $region5
    $region4: #{bert_forward.1} parent=1 // pred_region
      _
    $region5: #{bert_forward.1} parent=1 // pred_fallthru
      _
    // Predicated region
    $region6: #{bert_forward.1} parent=1 // pred_check
      _
    $region7: #{bert_forward.1} parent=1 // pred_check_branch
      %12 = sbr.rel (0) target = $region9
    $region8: #{bert_forward.1} parent=1 // pred_region
      _
    $region9: #{bert_forward.1} parent=1 // pred_fallthru
      _
    // Predicated region
    $region10: #{bert_forward.1} parent=1 // pred_check
      _
    $region11: #{bert_forward.1} parent=1 // pred_check_branch
      %14 = sbr.rel (0) target = $region13
    $region12: #{bert_forward.1} parent=1 // pred_region
      %s16 = ssub.s32 2560, 2560
      %17 = vsyncadd [#allocation3], %s16
      %s18 = sshll.u32 [#allocation2], 4
      %s19 = int_to_ptr.vmem [resolvable:$true] %s18
      %24 = dma.hbm_to_vmem [thread:$0]  %s2, 2560, %s19, [#allocation3], 128, 128, 8
    $region13: #{bert_forward.1} parent=1 // pred_fallthru
      _
    // Predicated region
    $region14: #{bert_forward.1} parent=1 // pred_check
      _
    $region15: #{bert_forward.1} parent=1 // pred_check_branch
      %26 = sbr.rel (0) target = $region17
    $region16: #{bert_forward.1} parent=1 // pred_region
      %27 = dma.done [#allocation3], 2560
    $region17: #{bert_forward.1} parent=1 // pred_fallthru
      _
    %29 = vst [vmem:[%s3] sm:$0xff] 0.0
    %30 = vst [vmem:[%s3 + $0x8] sm:$0xff] 0.0
    %31 = vst [vmem:[%s3 + $0x10] sm:$0xff] 0.0
    %32 = vst [vmem:[%s3 + $0x18] sm:$0xff] 0.0
    %v33 = vld [vmem:[%s0] sm:$0xff]
    %v34 = vld [vmem:[%s0 + $0x8] sm:$0xff]
    %v35 = vlaneseq
    %v36 = vand.u32 %v35, 127
    %v37 = vcvt.s32.f32 %v36
    %39 = vset.pattern.permute.xlu0 0
    %40 = vperm.xlu0 %39, %v33
    %v41 = vpop.permute.xlu0 %40
    %44 = vset.pattern.permute.xlu0 0
    %45 = vperm.xlu0 %44, %v34
    %v46 = vpop.permute.xlu0 %45
    %vm48 = vcmp.eq.f32.partialorder %v41, %v37
    %vm49 = vcmp.eq.f32.partialorder %v46, %v37
    %v50 = vsel %vm48, 1, 0
    %v51 = vsel %vm49, 1, 0
    %v52 = vcvt.s32.f32 %v50
    %v53 = vcvt.s32.f32 %v51
    %v54 = vld [vmem:[#allocation2 + $0x18] sm:$0xff]
    %v55 = vld [vmem:[#allocation2 + $0x20] sm:$0xff]
    %v56 = vld [vmem:[#allocation2 + $0x28] sm:$0xff]
    %v57 = vld [vmem:[#allocation2 + $0x30] sm:$0xff]
    %v58 = vld [vmem:[#allocation2 + $0x38] sm:$0xff]
    %v59 = vld [vmem:[#allocation2 + $0x40] sm:$0xff]
    %v60 = vld [vmem:[#allocation2 + $0x48] sm:$0xff]
    %v61 = vld [vmem:[#allocation2 + $0x50] sm:$0xff]
    %v62 = vld [vmem:[#allocation2 + $0x58] sm:$0xff]
    %v63 = vld [vmem:[#allocation2 + $0x60] sm:$0xff]
    %v64 = vld [vmem:[#allocation2 + $0x68] sm:$0xff]
    %v65 = vld [vmem:[#allocation2 + $0x70] sm:$0xff]
    %v66 = vld [vmem:[#allocation2 + $0x78] sm:$0xff]
    %v67 = vld [vmem:[#allocation2 + $0x80] sm:$0xff]
    %v68 = vld [vmem:[#allocation2 + $0x88] sm:$0xff]
    %v69 = vld [vmem:[#allocation2 + $0x90] sm:$0xff]
    %v70 = vld [vmem:[#allocation2 + $0x98] sm:$0x1]
    %v71 = vld [vmem:[#allocation2 + $0x99] sm:$0x1]
    %vm72 = vcmp.eq.f32.partialorder %v33, 0.0
    %vm73 = vcmp.eq.f32.partialorder %v34, 0.0
    %v74 = vsel %vm72, 1, 0
    %v75 = vsel %vm73, 1, 0
    %76 = vset.pattern.permute.xlu0 1
    %77 = vperm.xlu0 %76, %v74
    %v78 = vpop.permute.xlu0 %77
    %79 = vset.pattern.permute.xlu0 1
    %80 = vperm.xlu0 %79, %v75
    %v81 = vpop.permute.xlu0 %80
    %vm82 = vcmp.eq.s32.totalorder %v78, 1
    %vm83 = vcmp.eq.s32.totalorder %v81, 1
    %v84 = vlaneseq
    %v85 = vshrl.u32 %v84, 7
    %v86 = vsub.s32 0, %v85
    %v87 = vrot.slane %v70, %v86
    %v88 = vlaneseq
    %v89 = vshrl.u32 %v88, 7
    %v90 = vsub.s32 0, %v89
    %v91 = vrot.slane %v71, %v90
    %v92 = vsel %vm82, %v87, %v91
    %v93 = vsel %vm83, %v87, %v91
    %94 = vmatprep.subr.mxu0 0.0
    %95 = vmatpush1.msra.mxu0 %v54
    %96 = vmatprep.subr.mxu0 0.0
    %97 = vmatpush1.msra.mxu0 %v55
    %98 = vmatprep.subr.mxu0 0.0
    %99 = vmatpush1.msra.mxu0 %v56
    %100 = vmatprep.subr.mxu0 0.0
    %101 = vmatpush1.msra.mxu0 %v57
    %102 = vmatprep.subr.mxu0 0.0
    %103 = vmatpush1.msra.mxu0 %v58
    %104 = vmatprep.subr.mxu0 0.0
    %105 = vmatpush1.msra.mxu0 %v59
    %106 = vmatprep.subr.mxu0 0.0
    %107 = vmatpush1.msra.mxu0 %v60
    %108 = vmatprep.subr.mxu0 0.0
    %109 = vmatpush1.msra.mxu0 %v61
    %110 = vmatprep.subr.mxu0 0.0
    %111 = vmatpush1.msra.mxu0 %v62
    %112 = vmatprep.subr.mxu0 0.0
    %113 = vmatpush1.msra.mxu0 %v63
    %114 = vmatprep.subr.mxu0 0.0
    %115 = vmatpush1.msra.mxu0 %v64
    %116 = vmatprep.subr.mxu0 0.0
    %117 = vmatpush1.msra.mxu0 %v65
    %118 = vmatprep.subr.mxu0 0.0
    %119 = vmatpush1.msra.mxu0 %v66
    %120 = vmatprep.subr.mxu0 0.0
    %121 = vmatpush1.msra.mxu0 %v67
    %122 = vmatprep.subr.mxu0 0.0
    %123 = vmatpush1.msra.mxu0 %v68
    %124 = vmatprep.subr.mxu0 0.0
    %125 = vmatpush1.msra.mxu0 %v69
    %126 = vmatprep.subr.mxu0 0.0
    %127 = vmatpush1.msra.mxu0 0.0
    %128 = vmatprep.subr.mxu0 0.0
    %129 = vmatpush1.msra.mxu0 0.0
    %130 = vmatprep.subr.mxu0 0.0
    %131 = vmatpush1.msra.mxu0 0.0
    %132 = vmatprep.subr.mxu0 0.0
    %133 = vmatpush1.msra.mxu0 0.0
    %134 = vmatprep.subr.mxu0 0.0
    %135 = vmatpush1.msra.mxu0 0.0
    %136 = vmatprep.subr.mxu0 0.0
    %137 = vmatpush1.msra.mxu0 0.0
    %138 = vmatprep.subr.mxu0 0.0
    %139 = vmatpush1.msra.mxu0 0.0
    %140 = vmatprep.subr.mxu0 0.0
    %141 = vmatpush1.msra.mxu0 0.0
    %142 = vmatprep.subr.mxu0 0.0
    %143 = vmatpush1.msra.mxu0 0.0
    %144 = vmatprep.subr.mxu0 0.0
    %145 = vmatpush1.msra.mxu0 0.0
    %146 = vmatprep.subr.mxu0 0.0
    %147 = vmatpush1.msra.mxu0 0.0
    %148 = vmatprep.subr.mxu0 0.0
    %149 = vmatpush1.msra.mxu0 0.0
    %150 = vmatprep.subr.mxu0 0.0
    %151 = vmatpush1.msra.mxu0 0.0
    %152 = vmatprep.subr.mxu0 0.0
    %153 = vmatpush1.msra.mxu0 0.0
    %154 = vmatprep.subr.mxu0 0.0
    %155 = vmatpush1.msra.mxu0 0.0
    %156 = vmatprep.subr.mxu0 0.0
    %157 = vmatpush1.msra.mxu0 0.0
    %158 = vmatprep.mubr.f32.mxu0 0.0
    %159 = vmatmul.mubr.f32.gmra.mrb[0].mxu0 %v52
    %v160 = vpop.f32.mrb[0].mxu0
    %v161 = vadd.f32 %v92, %v160
    %v162 = vpop.f32.mrb[0].mxu0
    %163 = vmatprep.mubr.f32.mxu0 0.0
    %164 = vmatmul.mubr.f32.gmra.mrb[0].mxu0 %v53
    %v165 = vpop.f32.mrb[0].mxu0
    %v166 = vadd.f32 %v93, %v165
    %v167 = vpop.f32.mrb[0].mxu0
    %168 = vdwg.mxu0
    %v169 = vld [vmem:[#allocation2 + $0x15] sm:$0x1]
    %v170 = vlaneseq
    %v171 = vshrl.u32 %v170, 7
    %v172 = vsub.s32 0, %v171
    %v173 = vrot.slane %v169, %v172
    %v174 = vadd.f32 %v161, %v173
    %v175 = vadd.f32 %v166, %v173
    %176 = vset.pattern.permute.xlu0 3
    %177 = vperm.xlu0 %176, %v33
    %v178 = vpop.permute.xlu0 %177
    %vm180 = vcmp.lt.f32.partialorder %v37, %v178
    %v181 = vsel %vm180, 1, 0
    %v183 = vunpack.c.l.s4 1966171168
    %v184 = vunpack.c.0.s8 %v183
    %v185 = vlaneseq
    %v186 = vshrl.u32 %v185, 7
    %v187 = vsub.s32 %v184, %v186
    %v188 = vrot.slane %v181, %v187
    %v189 = vcombine.high %v188, %v188
    %v191 = vunpack.c.l.s4 1966171168
    %v192 = vunpack.c.0.s8 %v191
    %v193 = vlaneseq
    %v194 = vshrl.u32 %v193, 7
    %v195 = vsub.s32 %v192, %v194
    %v196 = vrot.slane %v188, %v195
    %v198 = vunpack.c.l.s4 1966171168
    %v199 = vunpack.c.0.s8 %v198
    %v200 = vlaneseq
    %v201 = vshrl.u32 %v200, 7
    %v202 = vsub.s32 %v199, %v201
    %v203 = vrot.slane %v189, %v202
    %vm204 = vcmp.ne.s32.totalorder %v196, 0
    %vm205 = vcmp.ne.s32.totalorder %v203, 0
    %v206 = vld [vmem:[%s1] sm:$0xf]
    %v207 = vld [vmem:[%s1 + $0x4] sm:$0xf]
    %v208 = vld [vmem:[%s1 + $0x8] sm:$0xf]
    %v209 = vld [vmem:[%s1 + $0xc] sm:$0xf]
    %v210 = vpack.c.bf16 %v175, %v174
    %v211 = vld [vmem:[#allocation2] sm:$0x1]
    %v212 = vlaneseq
    %v213 = vshrl.u32 %v212, 7
    %v214 = vsub.s32 0, %v213
    %v215 = vrot.slane %v211, %v214
    %v220 = vunpack.c.l.b16 %v206
    %v221 = vunpack.c.l.b16 %v207
    %v222 = vunpack.c.l.b16 %v208
    %v223 = vunpack.c.l.b16 %v209
    %v224 = vpack.c.b16 %v221, %v220
    %v225 = vpack.c.b16 %v223, %v222
    %vm228 = vcmask 261120
    %v230 = vsel %vm228, %v210, 0
    %232 = vmatprep.subr.bf16.mxu0 0
    %233 = vmatpush1.bf16.msra.mxu0 %v224
    %234 = vmatprep.subr.bf16.mxu0 0
    %235 = vmatpush1.bf16.msra.mxu0 %v225
    %236 = vmatprep.subr.bf16.mxu0 0
    %237 = vmatpush1.bf16.msra.mxu0 0
    %238 = vmatprep.subr.bf16.mxu0 0
    %239 = vmatpush1.bf16.msra.mxu0 0
    %240 = vmatprep.subr.bf16.mxu0 0
    %241 = vmatpush1.bf16.msra.mxu0 0
    %242 = vmatprep.subr.bf16.mxu0 0
    %243 = vmatpush1.bf16.msra.mxu0 0
    %244 = vmatprep.subr.bf16.mxu0 0
    %245 = vmatpush1.bf16.msra.mxu0 0
    %246 = vmatprep.subr.bf16.mxu0 0
    %247 = vmatpush1.bf16.msra.mxu0 0
    %248 = vmatprep.subr.bf16.mxu0 0
    %249 = vmatpush1.bf16.msra.mxu0 0
    %250 = vmatprep.subr.bf16.mxu0 0
    %251 = vmatpush1.bf16.msra.mxu0 0
    %252 = vmatprep.subr.bf16.mxu0 0
    %253 = vmatpush1.bf16.msra.mxu0 0
    %254 = vmatprep.subr.bf16.mxu0 0
    %255 = vmatpush1.bf16.msra.mxu0 0
    %256 = vmatprep.subr.bf16.mxu0 0
    %257 = vmatpush1.bf16.msra.mxu0 0
    %258 = vmatprep.subr.bf16.mxu0 0
    %259 = vmatpush1.bf16.msra.mxu0 0
    %260 = vmatprep.subr.bf16.mxu0 0
    %261 = vmatpush1.bf16.msra.mxu0 0
    %262 = vmatprep.subr.bf16.mxu0 0
    %263 = vmatpush1.bf16.msra.mxu0 0
    %264 = vmatprep.mubr.bf16.mxu0 0
    %265 = vmatmul.mubr.bf16.gmra.mrb[0].mxu0 %v230
    %v266 = vpop.f32.mrb[0].mxu0
    %v267 = vadd.f32 %v215, %v266
    %v268 = vpop.f32.mrb[0].mxu0
    %v269 = vpop.f32.mrb[0].mxu0
    %v270 = vadd.f32 %v215, %v269
    %v271 = vpop.f32.mrb[0].mxu0
    %272 = vdwg.mxu0
    %v273 = vpack.c.bf16 %v267, %v267
    %v274 = vpack.c.bf16 %v270, %v270
    %276 = vrot.lane.b32.xlu0 %v273, 96
    %v277 = vpop.permute.xlu0 %276
    %vm278 = vcmask 130048
    %v280 = vsel %vm278, %v273, 0
    %v283 = vsel %vm278, %v277, 0
    %285 = vmatprep.subr.bf16.mxu0 0
    %286 = vmatpush1.bf16.xpose.msra.mxu0 %v283
    %287 = vmatprep.subr.bf16.mxu0 0
    %288 = vmatpush1.bf16.xpose.msra.mxu0 0
    %289 = vmatprep.subr.bf16.mxu0 0
    %290 = vmatpush1.bf16.xpose.msra.mxu0 0
    %291 = vmatprep.subr.bf16.mxu0 0
    %292 = vmatpush1.bf16.xpose.msra.mxu0 0
    %293 = vmatprep.subr.bf16.mxu0 0
    %294 = vmatpush1.bf16.xpose.msra.mxu0 0
    %295 = vmatprep.subr.bf16.mxu0 0
    %296 = vmatpush1.bf16.xpose.msra.mxu0 0
    %297 = vmatprep.subr.bf16.mxu0 0
    %298 = vmatpush1.bf16.xpose.msra.mxu0 0
    %299 = vmatprep.subr.bf16.mxu0 0
    %300 = vmatpush1.bf16.xpose.msra.mxu0 0
    %301 = vmatprep.subr.bf16.mxu0 0
    %302 = vmatpush1.bf16.xpose.msra.mxu0 0
    %303 = vmatprep.subr.bf16.mxu0 0
    %304 = vmatpush1.bf16.xpose.msra.mxu0 0
    %305 = vmatprep.subr.bf16.mxu0 0
    %306 = vmatpush1.bf16.xpose.msra.mxu0 0
    %307 = vmatprep.subr.bf16.mxu0 0
    %308 = vmatpush1.bf16.xpose.msra.mxu0 0
    %309 = vmatprep.subr.bf16.mxu0 0
    %310 = vmatpush1.bf16.xpose.msra.mxu0 0
    %311 = vmatprep.subr.bf16.mxu0 0
    %312 = vmatpush1.bf16.xpose.msra.mxu0 0
    %313 = vmatprep.subr.bf16.mxu0 0
    %314 = vmatpush1.bf16.xpose.msra.mxu0 0
    %315 = vmatprep.subr.bf16.mxu0 0
    %316 = vmatpush1.bf16.xpose.msra.mxu0 0
    %317 = vmatprep.mubr.bf16.mxu0 0
    %318 = vmatmul.mubr.bf16.gmra.mrb[0].mxu0 %v280
    %v319 = vpop.f32.mrb[0].mxu0
    %v320 = vadd.f32 0.0, %v319
    %v321 = vpop.f32.mrb[0].mxu0
    %v322 = vpop.f32.mrb[0].mxu0
    %v323 = vpop.f32.mrb[0].mxu0
    %324 = vdwg.mxu0
    %326 = vrot.lane.b32.xlu0 %v274, 96
    %v327 = vpop.permute.xlu0 %326
    %v329 = vsel %vm278, %v274, 0
    %v332 = vsel %vm278, %v327, 0
    %334 = vmatprep.subr.bf16.mxu0 0
    %335 = vmatpush1.bf16.xpose.msra.mxu0 %v332
    %336 = vmatprep.subr.bf16.mxu0 0
    %337 = vmatpush1.bf16.xpose.msra.mxu0 0
    %338 = vmatprep.subr.bf16.mxu0 0
    %339 = vmatpush1.bf16.xpose.msra.mxu0 0
    %340 = vmatprep.subr.bf16.mxu0 0
    %341 = vmatpush1.bf16.xpose.msra.mxu0 0
    %342 = vmatprep.subr.bf16.mxu0 0
    %343 = vmatpush1.bf16.xpose.msra.mxu0 0
    %344 = vmatprep.subr.bf16.mxu0 0
    %345 = vmatpush1.bf16.xpose.msra.mxu0 0
    %346 = vmatprep.subr.bf16.mxu0 0
    %347 = vmatpush1.bf16.xpose.msra.mxu0 0
    %348 = vmatprep.subr.bf16.mxu0 0
    %349 = vmatpush1.bf16.xpose.msra.mxu0 0
    %350 = vmatprep.subr.bf16.mxu0 0
    %351 = vmatpush1.bf16.xpose.msra.mxu0 0
    %352 = vmatprep.subr.bf16.mxu0 0
    %353 = vmatpush1.bf16.xpose.msra.mxu0 0
    %354 = vmatprep.subr.bf16.mxu0 0
    %355 = vmatpush1.bf16.xpose.msra.mxu0 0
    %356 = vmatprep.subr.bf16.mxu0 0
    %357 = vmatpush1.bf16.xpose.msra.mxu0 0
    %358 = vmatprep.subr.bf16.mxu0 0
    %359 = vmatpush1.bf16.xpose.msra.mxu0 0
    %360 = vmatprep.subr.bf16.mxu0 0
    %361 = vmatpush1.bf16.xpose.msra.mxu0 0
    %362 = vmatprep.subr.bf16.mxu0 0
    %363 = vmatpush1.bf16.xpose.msra.mxu0 0
    %364 = vmatprep.subr.bf16.mxu0 0
    %365 = vmatpush1.bf16.xpose.msra.mxu0 0
    %366 = vmatprep.mubr.bf16.mxu0 0
    %367 = vmatmul.mubr.bf16.gmra.mrb[0].mxu0 %v329
    %v368 = vpop.f32.mrb[0].mxu0
    %v369 = vadd.f32 0.0, %v368
    %v370 = vpop.f32.mrb[0].mxu0
    %v371 = vpop.f32.mrb[0].mxu0
    %v372 = vpop.f32.mrb[0].mxu0
    %373 = vdwg.mxu0
    %v374 = vmul.f32 %v320, 0.25
    %v375 = vmul.f32 %v369, 0.25
    %v376 = vsel %vm204, 1, 0
    %v377 = vsel %vm205, 1, 0
    %v378 = vlaneseq
    %v379 = vshrl.u32 %v378, 7
    %v380 = vsub.s32 0, %v379
    %v381 = vrot.slane %v376, %v380
    %v382 = vlaneseq
    %v383 = vshrl.u32 %v382, 7
    %v384 = vsub.s32 0, %v383
    %v385 = vrot.slane %v377, %v384
    %vm386 = vcmp.eq.s32.totalorder %v381, 1
    %vm387 = vcmp.eq.s32.totalorder %v385, 1
    %v388 = vsel %vm386, %v374, -1000000.0
    %v389 = vsel %vm387, %v375, -1000000.0
    %vm390 = vcmask 64512
    %v391 = vsel %vm390, %v388, -inf
    %392 = vmax.xlane.f32.xlu0 %v391
    %v393 = vpop.xlane.xlu0 %392
    %v394 = vsel %vm390, %v389, -inf
    %395 = vmax.xlane.f32.xlu0 %v394
    %v396 = vpop.xlane.xlu0 %395
    %v397 = vsub.f32 %v388, %v393
    %v398 = vsub.f32 %v389, %v396
    %v399 = vmul.f32 %v397, 1.442695
    %v400 = vpow.pop %v399
    %v401 = vmul.f32 %v398, 1.442695
    %v402 = vpow.pop %v401
    %v403 = vsel %vm390, %v400, 0.0
    %404 = vadd.xlane.f32.xlu0 %v403
    %v405 = vpop.xlane.xlu0 %404
    %v406 = vsel %vm390, %v402, 0.0
    %407 = vadd.xlane.f32.xlu0 %v406
    %v408 = vpop.xlane.xlu0 %407
    %v409 = vrcp.pop %v405
    %v410 = vrcp.pop %v408
    %v411 = vmul.f32 %v400, %v409
    %v412 = vmul.f32 %v402, %v410
    %v413 = vpack.c.bf16 %v411, %v411
    %v414 = vpack.c.bf16 %v412, %v412
    %415 = vrot.lane.b32.xlu0 %v273, 64
    %v416 = vpop.permute.xlu0 %415
    %v418 = vsel %vm390, %v413, 0
    %vm420 = vcmask 1043456
    %v422 = vsel %vm420, %v416, 0
    %424 = vmatprep.subr.bf16.mxu0 0
    %425 = vmatpush1.bf16.msra.mxu0 %v422
    %426 = vmatprep.subr.bf16.mxu0 0
    %427 = vmatpush1.bf16.msra.mxu0 0
    %428 = vmatprep.subr.bf16.mxu0 0
    %429 = vmatpush1.bf16.msra.mxu0 0
    %430 = vmatprep.subr.bf16.mxu0 0
    %431 = vmatpush1.bf16.msra.mxu0 0
    %432 = vmatprep.subr.bf16.mxu0 0
    %433 = vmatpush1.bf16.msra.mxu0 0
    %434 = vmatprep.subr.bf16.mxu0 0
    %435 = vmatpush1.bf16.msra.mxu0 0
    %436 = vmatprep.subr.bf16.mxu0 0
    %437 = vmatpush1.bf16.msra.mxu0 0
    %438 = vmatprep.subr.bf16.mxu0 0
    %439 = vmatpush1.bf16.msra.mxu0 0
    %440 = vmatprep.subr.bf16.mxu0 0
    %441 = vmatpush1.bf16.msra.mxu0 0
    %442 = vmatprep.subr.bf16.mxu0 0
    %443 = vmatpush1.bf16.msra.mxu0 0
    %444 = vmatprep.subr.bf16.mxu0 0
    %445 = vmatpush1.bf16.msra.mxu0 0
    %446 = vmatprep.subr.bf16.mxu0 0
    %447 = vmatpush1.bf16.msra.mxu0 0
    %448 = vmatprep.subr.bf16.mxu0 0
    %449 = vmatpush1.bf16.msra.mxu0 0
    %450 = vmatprep.subr.bf16.mxu0 0
    %451 = vmatpush1.bf16.msra.mxu0 0
    %452 = vmatprep.subr.bf16.mxu0 0
    %453 = vmatpush1.bf16.msra.mxu0 0
    %454 = vmatprep.subr.bf16.mxu0 0
    %455 = vmatpush1.bf16.msra.mxu0 0
    %456 = vmatprep.mubr.bf16.mxu0 0
    %457 = vmatmul.mubr.bf16.gmra.mrb[0].mxu0 %v418
    %v458 = vpop.f32.mrb[0].mxu0
    %v459 = vadd.f32 0.0, %v458
    %v460 = vpop.f32.mrb[0].mxu0
    %v461 = vpop.f32.mrb[0].mxu0
    %v462 = vpop.f32.mrb[0].mxu0
    %463 = vdwg.mxu0
    %464 = vrot.lane.b32.xlu0 %v274, 64
    %v465 = vpop.permute.xlu0 %464
    %v467 = vsel %vm390, %v414, 0
    %v470 = vsel %vm420, %v465, 0
    %472 = vmatprep.subr.bf16.mxu0 0
    %473 = vmatpush1.bf16.msra.mxu0 %v470
    %474 = vmatprep.subr.bf16.mxu0 0
    %475 = vmatpush1.bf16.msra.mxu0 0
    %476 = vmatprep.subr.bf16.mxu0 0
    %477 = vmatpush1.bf16.msra.mxu0 0
    %478 = vmatprep.subr.bf16.mxu0 0
    %479 = vmatpush1.bf16.msra.mxu0 0
    %480 = vmatprep.subr.bf16.mxu0 0
    %481 = vmatpush1.bf16.msra.mxu0 0
    %482 = vmatprep.subr.bf16.mxu0 0
    %483 = vmatpush1.bf16.msra.mxu0 0
    %484 = vmatprep.subr.bf16.mxu0 0
    %485 = vmatpush1.bf16.msra.mxu0 0
    %486 = vmatprep.subr.bf16.mxu0 0
    %487 = vmatpush1.bf16.msra.mxu0 0
    %488 = vmatprep.subr.bf16.mxu0 0
    %489 = vmatpush1.bf16.msra.mxu0 0
    %490 = vmatprep.subr.bf16.mxu0 0
    %491 = vmatpush1.bf16.msra.mxu0 0
    %492 = vmatprep.subr.bf16.mxu0 0
    %493 = vmatpush1.bf16.msra.mxu0 0
    %494 = vmatprep.subr.bf16.mxu0 0
    %495 = vmatpush1.bf16.msra.mxu0 0
    %496 = vmatprep.subr.bf16.mxu0 0
    %497 = vmatpush1.bf16.msra.mxu0 0
    %498 = vmatprep.subr.bf16.mxu0 0
    %499 = vmatpush1.bf16.msra.mxu0 0
    %500 = vmatprep.subr.bf16.mxu0 0
    %501 = vmatpush1.bf16.msra.mxu0 0
    %502 = vmatprep.subr.bf16.mxu0 0
    %503 = vmatpush1.bf16.msra.mxu0 0
    %504 = vmatprep.mubr.bf16.mxu0 0
    %505 = vmatmul.mubr.bf16.gmra.mrb[0].mxu0 %v467
    %v506 = vpop.f32.mrb[0].mxu0
    %v507 = vadd.f32 0.0, %v506
    %v508 = vpop.f32.mrb[0].mxu0
    %v509 = vpop.f32.mrb[0].mxu0
    %v510 = vpop.f32.mrb[0].mxu0
    %511 = vdwg.mxu0
    %v512 = vld [vmem:[%s1 + $0x10] sm:$0xf]
    %v513 = vld [vmem:[%s1 + $0x14] sm:$0xf]
    %v514 = vpack.c.bf16 %v507, %v459
    %515 = vrot.lane.b32.xlu0 %v273, 112
    %v516 = vpop.permute.xlu0 %515
    %517 = vrot.lane.b32.xlu0 %v273, 80
    %v518 = vpop.permute.xlu0 %517
    %v520 = vsel %vm278, %v516, 0
    %v523 = vsel %vm278, %v518, 0
    %525 = vmatprep.subr.bf16.mxu0 0
    %526 = vmatpush1.bf16.xpose.msra.mxu0 %v523
    %527 = vmatprep.subr.bf16.mxu0 0
    %528 = vmatpush1.bf16.xpose.msra.mxu0 0
    %529 = vmatprep.subr.bf16.mxu0 0
    %530 = vmatpush1.bf16.xpose.msra.mxu0 0
    %531 = vmatprep.subr.bf16.mxu0 0
    %532 = vmatpush1.bf16.xpose.msra.mxu0 0
    %533 = vmatprep.subr.bf16.mxu0 0
    %534 = vmatpush1.bf16.xpose.msra.mxu0 0
    %535 = vmatprep.subr.bf16.mxu0 0
    %536 = vmatpush1.bf16.xpose.msra.mxu0 0
    %537 = vmatprep.subr.bf16.mxu0 0
    %538 = vmatpush1.bf16.xpose.msra.mxu0 0
    %539 = vmatprep.subr.bf16.mxu0 0
    %540 = vmatpush1.bf16.xpose.msra.mxu0 0
    %541 = vmatprep.subr.bf16.mxu0 0
    %542 = vmatpush1.bf16.xpose.msra.mxu0 0
    %543 = vmatprep.subr.bf16.mxu0 0
    %544 = vmatpush1.bf16.xpose.msra.mxu0 0
    %545 = vmatprep.subr.bf16.mxu0 0
    %546 = vmatpush1.bf16.xpose.msra.mxu0 0
    %547 = vmatprep.subr.bf16.mxu0 0
    %548 = vmatpush1.bf16.xpose.msra.mxu0 0
    %549 = vmatprep.subr.bf16.mxu0 0
    %550 = vmatpush1.bf16.xpose.msra.mxu0 0
    %551 = vmatprep.subr.bf16.mxu0 0
    %552 = vmatpush1.bf16.xpose.msra.mxu0 0
    %553 = vmatprep.subr.bf16.mxu0 0
    %554 = vmatpush1.bf16.xpose.msra.mxu0 0
    %555 = vmatprep.subr.bf16.mxu0 0
    %556 = vmatpush1.bf16.xpose.msra.mxu0 0
    %557 = vmatprep.mubr.bf16.mxu0 0
    %558 = vmatmul.mubr.bf16.gmra.mrb[0].mxu0 %v520
    %v559 = vpop.f32.mrb[0].mxu0
    %v560 = vadd.f32 0.0, %v559
    %v561 = vpop.f32.mrb[0].mxu0
    %v562 = vpop.f32.mrb[0].mxu0
    %v563 = vpop.f32.mrb[0].mxu0
    %564 = vdwg.mxu0
    %565 = vrot.lane.b32.xlu0 %v274, 112
    %v566 = vpop.permute.xlu0 %565
    %567 = vrot.lane.b32.xlu0 %v274, 80
    %v568 = vpop.permute.xlu0 %567
    %v570 = vsel %vm278, %v566, 0
    %v573 = vsel %vm278, %v568, 0
    %575 = vmatprep.subr.bf16.mxu0 0
    %576 = vmatpush1.bf16.xpose.msra.mxu0 %v573
    %577 = vmatprep.subr.bf16.mxu0 0
    %578 = vmatpush1.bf16.xpose.msra.mxu0 0
    %579 = vmatprep.subr.bf16.mxu0 0
    %580 = vmatpush1.bf16.xpose.msra.mxu0 0
    %581 = vmatprep.subr.bf16.mxu0 0
    %582 = vmatpush1.bf16.xpose.msra.mxu0 0
    %583 = vmatprep.subr.bf16.mxu0 0
    %584 = vmatpush1.bf16.xpose.msra.mxu0 0
    %585 = vmatprep.subr.bf16.mxu0 0
    %586 = vmatpush1.bf16.xpose.msra.mxu0 0
    %587 = vmatprep.subr.bf16.mxu0 0
    %588 = vmatpush1.bf16.xpose.msra.mxu0 0
    %589 = vmatprep.subr.bf16.mxu0 0
    %590 = vmatpush1.bf16.xpose.msra.mxu0 0
    %591 = vmatprep.subr.bf16.mxu0 0
    %592 = vmatpush1.bf16.xpose.msra.mxu0 0
    %593 = vmatprep.subr.bf16.mxu0 0
    %594 = vmatpush1.bf16.xpose.msra.mxu0 0
    %595 = vmatprep.subr.bf16.mxu0 0
    %596 = vmatpush1.bf16.xpose.msra.mxu0 0
    %597 = vmatprep.subr.bf16.mxu0 0
    %598 = vmatpush1.bf16.xpose.msra.mxu0 0
    %599 = vmatprep.subr.bf16.mxu0 0
    %600 = vmatpush1.bf16.xpose.msra.mxu0 0
    %601 = vmatprep.subr.bf16.mxu0 0
    %602 = vmatpush1.bf16.xpose.msra.mxu0 0
    %603 = vmatprep.subr.bf16.mxu0 0
    %604 = vmatpush1.bf16.xpose.msra.mxu0 0
    %605 = vmatprep.subr.bf16.mxu0 0
    %606 = vmatpush1.bf16.xpose.msra.mxu0 0
    %607 = vmatprep.mubr.bf16.mxu0 0
    %608 = vmatmul.mubr.bf16.gmra.mrb[0].mxu0 %v570
    %v609 = vpop.f32.mrb[0].mxu0
    %v610 = vadd.f32 0.0, %v609
    %v611 = vpop.f32.mrb[0].mxu0
    %v612 = vpop.f32.mrb[0].mxu0
    %v613 = vpop.f32.mrb[0].mxu0
    %614 = vdwg.mxu0
    %v615 = vmul.f32 %v560, 0.25
    %v616 = vmul.f32 %v610, 0.25
    %v617 = vsel %vm386, %v615, -1000000.0
    %v618 = vsel %vm387, %v616, -1000000.0
    %v619 = vsel %vm390, %v617, -inf
    %620 = vmax.xlane.f32.xlu0 %v619
    %v621 = vpop.xlane.xlu0 %620
    %v622 = vsel %vm390, %v618, -inf
    %623 = vmax.xlane.f32.xlu0 %v622
    %v624 = vpop.xlane.xlu0 %623
    %v625 = vsub.f32 %v617, %v621
    %v626 = vsub.f32 %v618, %v624
    %v627 = vmul.f32 %v625, 1.442695
    %v628 = vpow.pop %v627
    %v629 = vmul.f32 %v626, 1.442695
    %v630 = vpow.pop %v629
    %v631 = vsel %vm390, %v628, 0.0
    %632 = vadd.xlane.f32.xlu0 %v631
    %v633 = vpop.xlane.xlu0 %632
    %v634 = vsel %vm390, %v630, 0.0
    %635 = vadd.xlane.f32.xlu0 %v634
    %v636 = vpop.xlane.xlu0 %635
    %v637 = vrcp.pop %v633
    %v638 = vrcp.pop %v636
    %v639 = vmul.f32 %v628, %v637
    %v640 = vmul.f32 %v630, %v638
    %v641 = vpack.c.bf16 %v639, %v639
    %v642 = vpack.c.bf16 %v640, %v640
    %643 = vrot.lane.b32.xlu0 %v273, 48
    %v644 = vpop.permute.xlu0 %643
    %v646 = vsel %vm390, %v641, 0
    %v649 = vsel %vm420, %v644, 0
    %651 = vmatprep.subr.bf16.mxu0 0
    %652 = vmatpush1.bf16.msra.mxu0 %v649
    %653 = vmatprep.subr.bf16.mxu0 0
    %654 = vmatpush1.bf16.msra.mxu0 0
    %655 = vmatprep.subr.bf16.mxu0 0
    %656 = vmatpush1.bf16.msra.mxu0 0
    %657 = vmatprep.subr.bf16.mxu0 0
    %658 = vmatpush1.bf16.msra.mxu0 0
    %659 = vmatprep.subr.bf16.mxu0 0
    %660 = vmatpush1.bf16.msra.mxu0 0
    %661 = vmatprep.subr.bf16.mxu0 0
    %662 = vmatpush1.bf16.msra.mxu0 0
    %663 = vmatprep.subr.bf16.mxu0 0
    %664 = vmatpush1.bf16.msra.mxu0 0
    %665 = vmatprep.subr.bf16.mxu0 0
    %666 = vmatpush1.bf16.msra.mxu0 0
    %667 = vmatprep.subr.bf16.mxu0 0
    %668 = vmatpush1.bf16.msra.mxu0 0
    %669 = vmatprep.subr.bf16.mxu0 0
    %670 = vmatpush1.bf16.msra.mxu0 0
    %671 = vmatprep.subr.bf16.mxu0 0
    %672 = vmatpush1.bf16.msra.mxu0 0
    %673 = vmatprep.subr.bf16.mxu0 0
    %674 = vmatpush1.bf16.msra.mxu0 0
    %675 = vmatprep.subr.bf16.mxu0 0
    %676 = vmatpush1.bf16.msra.mxu0 0
    %677 = vmatprep.subr.bf16.mxu0 0
    %678 = vmatpush1.bf16.msra.mxu0 0
    %679 = vmatprep.subr.bf16.mxu0 0
    %680 = vmatpush1.bf16.msra.mxu0 0
    %681 = vmatprep.subr.bf16.mxu0 0
    %682 = vmatpush1.bf16.msra.mxu0 0
    %683 = vmatprep.mubr.bf16.mxu0 0
    %684 = vmatmul.mubr.bf16.gmra.mrb[0].mxu0 %v646
    %v685 = vpop.f32.mrb[0].mxu0
    %v686 = vadd.f32 0.0, %v685
    %v687 = vpop.f32.mrb[0].mxu0
    %v688 = vpop.f32.mrb[0].mxu0
    %v689 = vpop.f32.mrb[0].mxu0
    %690 = vdwg.mxu0
    %691 = vrot.lane.b32.xlu0 %v274, 48
    %v692 = vpop.permute.xlu0 %691
    %v694 = vsel %vm390, %v642, 0
    %v697 = vsel %vm420, %v692, 0
    %699 = vmatprep.subr.bf16.mxu0 0
    %700 = vmatpush1.bf16.msra.mxu0 %v697
    %701 = vmatprep.subr.bf16.mxu0 0
    %702 = vmatpush1.bf16.msra.mxu0 0
    %703 = vmatprep.subr.bf16.mxu0 0
    %704 = vmatpush1.bf16.msra.mxu0 0
    %705 = vmatprep.subr.bf16.mxu0 0
    %706 = vmatpush1.bf16.msra.mxu0 0
    %707 = vmatprep.subr.bf16.mxu0 0
    %708 = vmatpush1.bf16.msra.mxu0 0
    %709 = vmatprep.subr.bf16.mxu0 0
    %710 = vmatpush1.bf16.msra.mxu0 0
    %711 = vmatprep.subr.bf16.mxu0 0
    %712 = vmatpush1.bf16.msra.mxu0 0
    %713 = vmatprep.subr.bf16.mxu0 0
    %714 = vmatpush1.bf16.msra.mxu0 0
    %715 = vmatprep.subr.bf16.mxu0 0
    %716 = vmatpush1.bf16.msra.mxu0 0
    %717 = vmatprep.subr.bf16.mxu0 0
    %718 = vmatpush1.bf16.msra.mxu0 0
    %719 = vmatprep.subr.bf16.mxu0 0
    %720 = vmatpush1.bf16.msra.mxu0 0
    %721 = vmatprep.subr.bf16.mxu0 0
    %722 = vmatpush1.bf16.msra.mxu0 0
    %723 = vmatprep.subr.bf16.mxu0 0
    %724 = vmatpush1.bf16.msra.mxu0 0
    %725 = vmatprep.subr.bf16.mxu0 0
    %726 = vmatpush1.bf16.msra.mxu0 0
    %727 = vmatprep.subr.bf16.mxu0 0
    %728 = vmatpush1.bf16.msra.mxu0 0
    %729 = vmatprep.subr.bf16.mxu0 0
    %730 = vmatpush1.bf16.msra.mxu0 0
    %731 = vmatprep.mubr.bf16.mxu0 0
    %732 = vmatmul.mubr.bf16.gmra.mrb[0].mxu0 %v694
    %v733 = vpop.f32.mrb[0].mxu0
    %v734 = vadd.f32 0.0, %v733
    %v735 = vpop.f32.mrb[0].mxu0
    %v736 = vpop.f32.mrb[0].mxu0
    %v737 = vpop.f32.mrb[0].mxu0
    %738 = vdwg.mxu0
    %v739 = vld [vmem:[%s1 + $0x18] sm:$0xf]
    %v740 = vld [vmem:[%s1 + $0x1c] sm:$0xf]
    %v741 = vpack.c.bf16 %v734, %v686
    %v744 = vunpack.c.l.b16 %v739
    %v745 = vunpack.c.l.b16 %v740
    %v746 = vpack.c.b16 %v745, %v744
    %v749 = vsel %vm278, %v741, 0
    %751 = vmatprep.subr.bf16.mxu0 0
    %752 = vmatpush1.bf16.msra.mxu0 %v746
    %753 = vmatprep.subr.bf16.mxu0 0
    %754 = vmatpush1.bf16.msra.mxu0 0
    %755 = vmatprep.subr.bf16.mxu0 0
    %756 = vmatpush1.bf16.msra.mxu0 0
    %757 = vmatprep.subr.bf16.mxu0 0
    %758 = vmatpush1.bf16.msra.mxu0 0
    %759 = vmatprep.subr.bf16.mxu0 0
    %760 = vmatpush1.bf16.msra.mxu0 0
    %761 = vmatprep.subr.bf16.mxu0 0
    %762 = vmatpush1.bf16.msra.mxu0 0
    %763 = vmatprep.subr.bf16.mxu0 0
    %764 = vmatpush1.bf16.msra.mxu0 0
    %765 = vmatprep.subr.bf16.mxu0 0
    %766 = vmatpush1.bf16.msra.mxu0 0
    %767 = vmatprep.subr.bf16.mxu0 0
    %768 = vmatpush1.bf16.msra.mxu0 0
    %769 = vmatprep.subr.bf16.mxu0 0
    %770 = vmatpush1.bf16.msra.mxu0 0
    %771 = vmatprep.subr.bf16.mxu0 0
    %772 = vmatpush1.bf16.msra.mxu0 0
    %773 = vmatprep.subr.bf16.mxu0 0
    %774 = vmatpush1.bf16.msra.mxu0 0
    %775 = vmatprep.subr.bf16.mxu0 0
    %776 = vmatpush1.bf16.msra.mxu0 0
    %777 = vmatprep.subr.bf16.mxu0 0
    %778 = vmatpush1.bf16.msra.mxu0 0
    %779 = vmatprep.subr.bf16.mxu0 0
    %780 = vmatpush1.bf16.msra.mxu0 0
    %781 = vmatprep.subr.bf16.mxu0 0
    %782 = vmatpush1.bf16.msra.mxu0 0
    %783 = vmatprep.mubr.bf16.mxu0 0
    %784 = vmatmul.mubr.bf16.gmra.mrb[0].mxu0 %v749
    %v785 = vpop.f32.mrb[0].mxu0
    %v786 = vadd.f32 0.0, %v785
    %v787 = vpop.f32.mrb[0].mxu0
    %v788 = vpop.f32.mrb[0].mxu0
    %v789 = vadd.f32 0.0, %v788
    %v790 = vpop.f32.mrb[0].mxu0
    %791 = vdwg.mxu0
    %v794 = vunpack.c.l.b16 %v512
    %v795 = vunpack.c.l.b16 %v513
    %v796 = vpack.c.b16 %v795, %v794
    %v799 = vsel %vm278, %v514, 0
    %801 = vmatprep.subr.bf16.mxu0 0
    %802 = vmatpush1.bf16.msra.mxu0 %v796
    %803 = vmatprep.subr.bf16.mxu0 0
    %804 = vmatpush1.bf16.msra.mxu0 0
    %805 = vmatprep.subr.bf16.mxu0 0
    %806 = vmatpush1.bf16.msra.mxu0 0
    %807 = vmatprep.subr.bf16.mxu0 0
    %808 = vmatpush1.bf16.msra.mxu0 0
    %809 = vmatprep.subr.bf16.mxu0 0
    %810 = vmatpush1.bf16.msra.mxu0 0
    %811 = vmatprep.subr.bf16.mxu0 0
    %812 = vmatpush1.bf16.msra.mxu0 0
    %813 = vmatprep.subr.bf16.mxu0 0
    %814 = vmatpush1.bf16.msra.mxu0 0
    %815 = vmatprep.subr.bf16.mxu0 0
    %816 = vmatpush1.bf16.msra.mxu0 0
    %817 = vmatprep.subr.bf16.mxu0 0
    %818 = vmatpush1.bf16.msra.mxu0 0
    %819 = vmatprep.subr.bf16.mxu0 0
    %820 = vmatpush1.bf16.msra.mxu0 0
    %821 = vmatprep.subr.bf16.mxu0 0
    %822 = vmatpush1.bf16.msra.mxu0 0
    %823 = vmatprep.subr.bf16.mxu0 0
    %824 = vmatpush1.bf16.msra.mxu0 0
    %825 = vmatprep.subr.bf16.mxu0 0
    %826 = vmatpush1.bf16.msra.mxu0 0
    %827 = vmatprep.subr.bf16.mxu0 0
    %828 = vmatpush1.bf16.msra.mxu0 0
    %829 = vmatprep.subr.bf16.mxu0 0
    %830 = vmatpush1.bf16.msra.mxu0 0
    %831 = vmatprep.subr.bf16.mxu0 0
    %832 = vmatpush1.bf16.msra.mxu0 0
    %833 = vmatprep.mubr.bf16.mxu0 0
    %834 = vmatmul.mubr.bf16.gmra.mrb[0].mxu0 %v799
    %v835 = vpop.f32.mrb[0].mxu0
    %v836 = vadd.f32 %v786, %v835
    %v837 = vpop.f32.mrb[0].mxu0
    %v838 = vpop.f32.mrb[0].mxu0
    %v839 = vadd.f32 %v789, %v838
    %v840 = vpop.f32.mrb[0].mxu0
    %841 = vdwg.mxu0
    %v842 = vld [vmem:[#allocation2 + $0x1] sm:$0x1]
    %v843 = vlaneseq
    %v844 = vshrl.u32 %v843, 7
    %v845 = vsub.s32 0, %v844
    %v846 = vrot.slane %v842, %v845
    %v847 = vadd.f32 %v836, %v846
    %v848 = vadd.f32 %v839, %v846
    %v849 = vadd.f32 %v847, %v174
    %v850 = vadd.f32 %v848, %v175
    %v851 = vld [vmem:[#allocation2 + $0x2] sm:$0x1]
    %v852 = vld [vmem:[#allocation2 + $0x3] sm:$0x1]
    %v853 = vsel %vm228, %v849, 0.0
    %854 = vadd.xlane.f32.xlu0 %v853
    %v855 = vpop.xlane.xlu0 %854
    %v856 = vsel %vm228, %v850, 0.0
    %857 = vadd.xlane.f32.xlu0 %v856
    %v858 = vpop.xlane.xlu0 %857
    %v859 = vrcp.pop 32.0
    %v860 = vmul.f32 %v855, %v859
    %v861 = vmul.f32 %v858, %v859
    %v862 = vsub.f32 %v849, %v860
    %v863 = vsub.f32 %v850, %v861
    %v864 = vmul.f32 %v862, %v862
    %v865 = vmul.f32 %v863, %v863
    %v866 = vsel %vm228, %v864, 0.0
    %867 = vadd.xlane.f32.xlu0 %v866
    %v868 = vpop.xlane.xlu0 %867
    %v869 = vsel %vm228, %v865, 0.0
    %870 = vadd.xlane.f32.xlu0 %v869
    %v871 = vpop.xlane.xlu0 %870
    %v872 = vmul.f32 %v868, %v859
    %v873 = vmul.f32 %v871, %v859
    %v874 = vadd.f32 %v872, 1e-05
    %v875 = vadd.f32 %v873, 1e-05
    %v876 = vrsqrt.pop %v874
    %v877 = vrsqrt.pop %v875
    %v878 = vmul.f32 %v862, %v876
    %v879 = vmul.f32 %v863, %v877
    %v880 = vlaneseq
    %v881 = vshrl.u32 %v880, 7
    %v882 = vsub.s32 0, %v881
    %v883 = vrot.slane %v851, %v882
    %v884 = vmul.f32 %v878, %v883
    %v885 = vmul.f32 %v879, %v883
    %v886 = vlaneseq
    %v887 = vshrl.u32 %v886, 7
    %v888 = vsub.s32 0, %v887
    %v889 = vrot.slane %v852, %v888
    %v890 = vadd.f32 %v884, %v889
    %v891 = vadd.f32 %v885, %v889
    %v892 = vld [vmem:[%s1 + $0x20] sm:$0xf]
    %v893 = vld [vmem:[%s1 + $0x24] sm:$0xf]
    %v894 = vld [vmem:[%s1 + $0x28] sm:$0xf]
    %v895 = vld [vmem:[%s1 + $0x2c] sm:$0xf]
    %v896 = vpack.c.bf16 %v891, %v890
    %v897 = vld [vmem:[#allocation2 + $0x4] sm:$0x1]
    %v898 = vlaneseq
    %v899 = vshrl.u32 %v898, 7
    %v900 = vsub.s32 0, %v899
    %v901 = vrot.slane %v897, %v900
    %v906 = vunpack.c.l.b16 %v892
    %v907 = vunpack.c.l.b16 %v893
    %v908 = vunpack.c.l.b16 %v894
    %v909 = vunpack.c.l.b16 %v895
    %v910 = vpack.c.b16 %v907, %v906
    %v911 = vpack.c.b16 %v909, %v908
    %v915 = vsel %vm228, %v896, 0
    %917 = vmatprep.subr.bf16.mxu0 0
    %918 = vmatpush1.bf16.msra.mxu0 %v910
    %919 = vmatprep.subr.bf16.mxu0 0
    %920 = vmatpush1.bf16.msra.mxu0 %v911
    %921 = vmatprep.subr.bf16.mxu0 0
    %922 = vmatpush1.bf16.msra.mxu0 0
    %923 = vmatprep.subr.bf16.mxu0 0
    %924 = vmatpush1.bf16.msra.mxu0 0
    %925 = vmatprep.subr.bf16.mxu0 0
    %926 = vmatpush1.bf16.msra.mxu0 0
    %927 = vmatprep.subr.bf16.mxu0 0
    %928 = vmatpush1.bf16.msra.mxu0 0
    %929 = vmatprep.subr.bf16.mxu0 0
    %930 = vmatpush1.bf16.msra.mxu0 0
    %931 = vmatprep.subr.bf16.mxu0 0
    %932 = vmatpush1.bf16.msra.mxu0 0
    %933 = vmatprep.subr.bf16.mxu0 0
    %934 = vmatpush1.bf16.msra.mxu0 0
    %935 = vmatprep.subr.bf16.mxu0 0
    %936 = vmatpush1.bf16.msra.mxu0 0
    %937 = vmatprep.subr.bf16.mxu0 0
    %938 = vmatpush1.bf16.msra.mxu0 0
    %939 = vmatprep.subr.bf16.mxu0 0
    %940 = vmatpush1.bf16.msra.mxu0 0
    %941 = vmatprep.subr.bf16.mxu0 0
    %942 = vmatpush1.bf16.msra.mxu0 0
    %943 = vmatprep.subr.bf16.mxu0 0
    %944 = vmatpush1.bf16.msra.mxu0 0
    %945 = vmatprep.subr.bf16.mxu0 0
    %946 = vmatpush1.bf16.msra.mxu0 0
    %947 = vmatprep.subr.bf16.mxu0 0
    %948 = vmatpush1.bf16.msra.mxu0 0
    %949 = vmatprep.mubr.bf16.mxu0 0
    %950 = vmatmul.mubr.bf16.gmra.mrb[0].mxu0 %v915
    %v951 = vpop.f32.mrb[0].mxu0
    %v952 = vadd.f32 %v901, %v951
    %v953 = vpop.f32.mrb[0].mxu0
    %v954 = vpop.f32.mrb[0].mxu0
    %v955 = vadd.f32 %v901, %v954
    %v956 = vpop.f32.mrb[0].mxu0
    %957 = vdwg.mxu0
    %v958 = vmax.f32 %v952, 0.0
    %v959 = vmax.f32 %v955, 0.0
    %v960 = vld [vmem:[%s1 + $0x30] sm:$0xf]
    %v961 = vld [vmem:[%s1 + $0x34] sm:$0xf]
    %v962 = vld [vmem:[%s1 + $0x38] sm:$0xf]
    %v963 = vld [vmem:[%s1 + $0x3c] sm:$0xf]
    %v964 = vld [vmem:[%s1 + $0x40] sm:$0xf]
    %v965 = vld [vmem:[%s1 + $0x44] sm:$0xf]
    %v966 = vld [vmem:[%s1 + $0x48] sm:$0xf]
    %v967 = vld [vmem:[%s1 + $0x4c] sm:$0xf]
    %v968 = vpack.c.bf16 %v959, %v958
    %v969 = vld [vmem:[#allocation2 + $0x5] sm:$0x1]
    %v970 = vlaneseq
    %v971 = vshrl.u32 %v970, 7
    %v972 = vsub.s32 0, %v971
    %v973 = vrot.slane %v969, %v972
    %v982 = vunpack.c.l.b16 %v960
    %v983 = vunpack.c.l.b16 %v961
    %v984 = vunpack.c.l.b16 %v962
    %v985 = vunpack.c.l.b16 %v963
    %v986 = vunpack.c.l.b16 %v964
    %v987 = vunpack.c.l.b16 %v965
    %v988 = vunpack.c.l.b16 %v966
    %v989 = vunpack.c.l.b16 %v967
    %v990 = vpack.c.b16 %v983, %v982
    %v991 = vpack.c.b16 %v985, %v984
    %v992 = vpack.c.b16 %v987, %v986
    %v993 = vpack.c.b16 %v989, %v988
    %vm998 = vcmask 523264
    %v1000 = vsel %vm998, %v968, 0
    %1002 = vmatprep.subr.bf16.mxu0 0
    %1003 = vmatpush1.bf16.msra.mxu0 %v990
    %1004 = vmatprep.subr.bf16.mxu0 0
    %1005 = vmatpush1.bf16.msra.mxu0 %v991
    %1006 = vmatprep.subr.bf16.mxu0 0
    %1007 = vmatpush1.bf16.msra.mxu0 %v992
    %1008 = vmatprep.subr.bf16.mxu0 0
    %1009 = vmatpush1.bf16.msra.mxu0 %v993
    %1010 = vmatprep.subr.bf16.mxu0 0
    %1011 = vmatpush1.bf16.msra.mxu0 0
    %1012 = vmatprep.subr.bf16.mxu0 0
    %1013 = vmatpush1.bf16.msra.mxu0 0
    %1014 = vmatprep.subr.bf16.mxu0 0
    %1015 = vmatpush1.bf16.msra.mxu0 0
    %1016 = vmatprep.subr.bf16.mxu0 0
    %1017 = vmatpush1.bf16.msra.mxu0 0
    %1018 = vmatprep.subr.bf16.mxu0 0
    %1019 = vmatpush1.bf16.msra.mxu0 0
    %1020 = vmatprep.subr.bf16.mxu0 0
    %1021 = vmatpush1.bf16.msra.mxu0 0
    %1022 = vmatprep.subr.bf16.mxu0 0
    %1023 = vmatpush1.bf16.msra.mxu0 0
    %1024 = vmatprep.subr.bf16.mxu0 0
    %1025 = vmatpush1.bf16.msra.mxu0 0
    %1026 = vmatprep.subr.bf16.mxu0 0
    %1027 = vmatpush1.bf16.msra.mxu0 0
    %1028 = vmatprep.subr.bf16.mxu0 0
    %1029 = vmatpush1.bf16.msra.mxu0 0
    %1030 = vmatprep.subr.bf16.mxu0 0
    %1031 = vmatpush1.bf16.msra.mxu0 0
    %1032 = vmatprep.subr.bf16.mxu0 0
    %1033 = vmatpush1.bf16.msra.mxu0 0
    %1034 = vmatprep.mubr.bf16.mxu0 0
    %1035 = vmatmul.mubr.bf16.gmra.mrb[0].mxu0 %v1000
    %v1036 = vpop.f32.mrb[0].mxu0
    %v1037 = vadd.f32 %v973, %v1036
    %v1038 = vpop.f32.mrb[0].mxu0
    %v1039 = vpop.f32.mrb[0].mxu0
    %v1040 = vadd.f32 %v973, %v1039
    %v1041 = vpop.f32.mrb[0].mxu0
    %1042 = vdwg.mxu0
    %v1043 = vadd.f32 %v1037, %v890
    %v1044 = vadd.f32 %v1040, %v891
    %v1045 = vld [vmem:[#allocation2 + $0x6] sm:$0x1]
    %v1046 = vld [vmem:[#allocation2 + $0x7] sm:$0x1]
    %v1047 = vsel %vm228, %v1043, 0.0
    %1048 = vadd.xlane.f32.xlu0 %v1047
    %v1049 = vpop.xlane.xlu0 %1048
    %v1050 = vsel %vm228, %v1044, 0.0
    %1051 = vadd.xlane.f32.xlu0 %v1050
    %v1052 = vpop.xlane.xlu0 %1051
    %v1053 = vmul.f32 %v1049, %v859
    %v1054 = vmul.f32 %v1052, %v859
    %v1055 = vsub.f32 %v1043, %v1053
    %v1056 = vsub.f32 %v1044, %v1054
    %v1057 = vmul.f32 %v1055, %v1055
    %v1058 = vmul.f32 %v1056, %v1056
    %v1059 = vsel %vm228, %v1057, 0.0
    %1060 = vadd.xlane.f32.xlu0 %v1059
    %v1061 = vpop.xlane.xlu0 %1060
    %v1062 = vsel %vm228, %v1058, 0.0
    %1063 = vadd.xlane.f32.xlu0 %v1062
    %v1064 = vpop.xlane.xlu0 %1063
    %v1065 = vmul.f32 %v1061, %v859
    %v1066 = vmul.f32 %v1064, %v859
    %v1067 = vadd.f32 %v1065, 1e-05
    %v1068 = vadd.f32 %v1066, 1e-05
    %v1069 = vrsqrt.pop %v1067
    %v1070 = vrsqrt.pop %v1068
    %v1071 = vmul.f32 %v1055, %v1069
    %v1072 = vmul.f32 %v1056, %v1070
    %v1073 = vlaneseq
    %v1074 = vshrl.u32 %v1073, 7
    %v1075 = vsub.s32 0, %v1074
    %v1076 = vrot.slane %v1045, %v1075
    %v1077 = vmul.f32 %v1071, %v1076
    %v1078 = vmul.f32 %v1072, %v1076
    %v1079 = vlaneseq
    %v1080 = vshrl.u32 %v1079, 7
    %v1081 = vsub.s32 0, %v1080
    %v1082 = vrot.slane %v1046, %v1081
    %v1083 = vadd.f32 %v1077, %v1082
    %v1084 = vadd.f32 %v1078, %v1082
    %v1085 = vld [vmem:[%s1 + $0x50] sm:$0xf]
    %v1086 = vld [vmem:[%s1 + $0x54] sm:$0xf]
    %v1087 = vld [vmem:[%s1 + $0x58] sm:$0xf]
    %v1088 = vld [vmem:[%s1 + $0x5c] sm:$0xf]
    %v1089 = vpack.c.bf16 %v1084, %v1083
    %v1090 = vld [vmem:[#allocation2 + $0x8] sm:$0x1]
    %v1091 = vlaneseq
    %v1092 = vshrl.u32 %v1091, 7
    %v1093 = vsub.s32 0, %v1092
    %v1094 = vrot.slane %v1090, %v1093
    %v1099 = vunpack.c.l.b16 %v1085
    %v1100 = vunpack.c.l.b16 %v1086
    %v1101 = vunpack.c.l.b16 %v1087
    %v1102 = vunpack.c.l.b16 %v1088
    %v1103 = vpack.c.b16 %v1100, %v1099
    %v1104 = vpack.c.b16 %v1102, %v1101
    %v1108 = vsel %vm228, %v1089, 0
    %1110 = vmatprep.subr.bf16.mxu0 0
    %1111 = vmatpush1.bf16.msra.mxu0 %v1103
    %1112 = vmatprep.subr.bf16.mxu0 0
    %1113 = vmatpush1.bf16.msra.mxu0 %v1104
    %1114 = vmatprep.subr.bf16.mxu0 0
    %1115 = vmatpush1.bf16.msra.mxu0 0
    %1116 = vmatprep.subr.bf16.mxu0 0
    %1117 = vmatpush1.bf16.msra.mxu0 0
    %1118 = vmatprep.subr.bf16.mxu0 0
    %1119 = vmatpush1.bf16.msra.mxu0 0
    %1120 = vmatprep.subr.bf16.mxu0 0
    %1121 = vmatpush1.bf16.msra.mxu0 0
    %1122 = vmatprep.subr.bf16.mxu0 0
    %1123 = vmatpush1.bf16.msra.mxu0 0
    %1124 = vmatprep.subr.bf16.mxu0 0
    %1125 = vmatpush1.bf16.msra.mxu0 0
    %1126 = vmatprep.subr.bf16.mxu0 0
    %1127 = vmatpush1.bf16.msra.mxu0 0
    %1128 = vmatprep.subr.bf16.mxu0 0
    %1129 = vmatpush1.bf16.msra.mxu0 0
    %1130 = vmatprep.subr.bf16.mxu0 0
    %1131 = vmatpush1.bf16.msra.mxu0 0
    %1132 = vmatprep.subr.bf16.mxu0 0
    %1133 = vmatpush1.bf16.msra.mxu0 0
    %1134 = vmatprep.subr.bf16.mxu0 0
    %1135 = vmatpush1.bf16.msra.mxu0 0
    %1136 = vmatprep.subr.bf16.mxu0 0
    %1137 = vmatpush1.bf16.msra.mxu0 0
    %1138 = vmatprep.subr.bf16.mxu0 0
    %1139 = vmatpush1.bf16.msra.mxu0 0
    %1140 = vmatprep.subr.bf16.mxu0 0
    %1141 = vmatpush1.bf16.msra.mxu0 0
    %1142 = vmatprep.mubr.bf16.mxu0 0
    %1143 = vmatmul.mubr.bf16.gmra.mrb[0].mxu0 %v1108
    %v1144 = vpop.f32.mrb[0].mxu0
    %v1145 = vadd.f32 %v1094, %v1144
    %v1146 = vpop.f32.mrb[0].mxu0
    %v1147 = vpop.f32.mrb[0].mxu0
    %v1148 = vadd.f32 %v1094, %v1147
    %v1149 = vpop.f32.mrb[0].mxu0
    %1150 = vdwg.mxu0
    %v1151 = vpack.c.bf16 %v1145, %v1145
    %v1152 = vpack.c.bf16 %v1148, %v1148
    %1154 = vrot.lane.b32.xlu0 %v1151, 96
    %v1155 = vpop.permute.xlu0 %1154
    %v1157 = vsel %vm278, %v1151, 0
    %v1160 = vsel %vm278, %v1155, 0
    %1162 = vmatprep.subr.bf16.mxu0 0
    %1163 = vmatpush1.bf16.xpose.msra.mxu0 %v1160
    %1164 = vmatprep.subr.bf16.mxu0 0
    %1165 = vmatpush1.bf16.xpose.msra.mxu0 0
    %1166 = vmatprep.subr.bf16.mxu0 0
    %1167 = vmatpush1.bf16.xpose.msra.mxu0 0
    %1168 = vmatprep.subr.bf16.mxu0 0
    %1169 = vmatpush1.bf16.xpose.msra.mxu0 0
    %1170 = vmatprep.subr.bf16.mxu0 0
    %1171 = vmatpush1.bf16.xpose.msra.mxu0 0
    %1172 = vmatprep.subr.bf16.mxu0 0
    %1173 = vmatpush1.bf16.xpose.msra.mxu0 0
    %1174 = vmatprep.subr.bf16.mxu0 0
    %1175 = vmatpush1.bf16.xpose.msra.mxu0 0
    %1176 = vmatprep.subr.bf16.mxu0 0
    %1177 = vmatpush1.bf16.xpose.msra.mxu0 0
    %1178 = vmatprep.subr.bf16.mxu0 0
    %1179 = vmatpush1.bf16.xpose.msra.mxu0 0
    %1180 = vmatprep.subr.bf16.mxu0 0
    %1181 = vmatpush1.bf16.xpose.msra.mxu0 0
    %1182 = vmatprep.subr.bf16.mxu0 0
    %1183 = vmatpush1.bf16.xpose.msra.mxu0 0
    %1184 = vmatprep.subr.bf16.mxu0 0
    %1185 = vmatpush1.bf16.xpose.msra.mxu0 0
    %1186 = vmatprep.subr.bf16.mxu0 0
    %1187 = vmatpush1.bf16.xpose.msra.mxu0 0
    %1188 = vmatprep.subr.bf16.mxu0 0
    %1189 = vmatpush1.bf16.xpose.msra.mxu0 0
    %1190 = vmatprep.subr.bf16.mxu0 0
    %1191 = vmatpush1.bf16.xpose.msra.mxu0 0
    %1192 = vmatprep.subr.bf16.mxu0 0
    %1193 = vmatpush1.bf16.xpose.msra.mxu0 0
    %1194 = vmatprep.mubr.bf16.mxu0 0
    %1195 = vmatmul.mubr.bf16.gmra.mrb[0].mxu0 %v1157
    %v1196 = vpop.f32.mrb[0].mxu0
    %v1197 = vadd.f32 0.0, %v1196
    %v1198 = vpop.f32.mrb[0].mxu0
    %v1199 = vpop.f32.mrb[0].mxu0
    %v1200 = vpop.f32.mrb[0].mxu0
    %1201 = vdwg.mxu0
    %1203 = vrot.lane.b32.xlu0 %v1152, 96
    %v1204 = vpop.permute.xlu0 %1203
    %v1206 = vsel %vm278, %v1152, 0
    %v1209 = vsel %vm278, %v1204, 0
    %1211 = vmatprep.subr.bf16.mxu0 0
    %1212 = vmatpush1.bf16.xpose.msra.mxu0 %v1209
    %1213 = vmatprep.subr.bf16.mxu0 0
    %1214 = vmatpush1.bf16.xpose.msra.mxu0 0
    %1215 = vmatprep.subr.bf16.mxu0 0
    %1216 = vmatpush1.bf16.xpose.msra.mxu0 0
    %1217 = vmatprep.subr.bf16.mxu0 0
    %1218 = vmatpush1.bf16.xpose.msra.mxu0 0
    %1219 = vmatprep.subr.bf16.mxu0 0
    %1220 = vmatpush1.bf16.xpose.msra.mxu0 0
    %1221 = vmatprep.subr.bf16.mxu0 0
    %1222 = vmatpush1.bf16.xpose.msra.mxu0 0
    %1223 = vmatprep.subr.bf16.mxu0 0
    %1224 = vmatpush1.bf16.xpose.msra.mxu0 0
    %1225 = vmatprep.subr.bf16.mxu0 0
    %1226 = vmatpush1.bf16.xpose.msra.mxu0 0
    %1227 = vmatprep.subr.bf16.mxu0 0
    %1228 = vmatpush1.bf16.xpose.msra.mxu0 0
    %1229 = vmatprep.subr.bf16.mxu0 0
    %1230 = vmatpush1.bf16.xpose.msra.mxu0 0
    %1231 = vmatprep.subr.bf16.mxu0 0
    %1232 = vmatpush1.bf16.xpose.msra.mxu0 0
    %1233 = vmatprep.subr.bf16.mxu0 0
    %1234 = vmatpush1.bf16.xpose.msra.mxu0 0
    %1235 = vmatprep.subr.bf16.mxu0 0
    %1236 = vmatpush1.bf16.xpose.msra.mxu0 0
    %1237 = vmatprep.subr.bf16.mxu0 0
    %1238 = vmatpush1.bf16.xpose.msra.mxu0 0
    %1239 = vmatprep.subr.bf16.mxu0 0
    %1240 = vmatpush1.bf16.xpose.msra.mxu0 0
    %1241 = vmatprep.subr.bf16.mxu0 0
    %1242 = vmatpush1.bf16.xpose.msra.mxu0 0
    %1243 = vmatprep.mubr.bf16.mxu0 0
    %1244 = vmatmul.mubr.bf16.gmra.mrb[0].mxu0 %v1206
    %v1245 = vpop.f32.mrb[0].mxu0
    %v1246 = vadd.f32 0.0, %v1245
    %v1247 = vpop.f32.mrb[0].mxu0
    %v1248 = vpop.f32.mrb[0].mxu0
    %v1249 = vpop.f32.mrb[0].mxu0
    %1250 = vdwg.mxu0
    %v1251 = vmul.f32 %v1197, 0.25
    %v1252 = vmul.f32 %v1246, 0.25
    %v1253 = vsel %vm386, %v1251, -1000000.0
    %v1254 = vsel %vm387, %v1252, -1000000.0
    %v1255 = vsel %vm390, %v1253, -inf
    %1256 = vmax.xlane.f32.xlu0 %v1255
    %v1257 = vpop.xlane.xlu0 %1256
    %v1258 = vsel %vm390, %v1254, -inf
    %1259 = vmax.xlane.f32.xlu0 %v1258
    %v1260 = vpop.xlane.xlu0 %1259
    %v1261 = vsub.f32 %v1253, %v1257
    %v1262 = vsub.f32 %v1254, %v1260
    %v1263 = vmul.f32 %v1261, 1.442695
    %v1264 = vpow.pop %v1263
    %v1265 = vmul.f32 %v1262, 1.442695
    %v1266 = vpow.pop %v1265
    %v1267 = vsel %vm390, %v1264, 0.0
    %1268 = vadd.xlane.f32.xlu0 %v1267
    %v1269 = vpop.xlane.xlu0 %1268
    %v1270 = vsel %vm390, %v1266, 0.0
    %1271 = vadd.xlane.f32.xlu0 %v1270
    %v1272 = vpop.xlane.xlu0 %1271
    %v1273 = vrcp.pop %v1269
    %v1274 = vrcp.pop %v1272
    %v1275 = vmul.f32 %v1264, %v1273
    %v1276 = vmul.f32 %v1266, %v1274
    %v1277 = vpack.c.bf16 %v1275, %v1275
    %v1278 = vpack.c.bf16 %v1276, %v1276
    %1279 = vrot.lane.b32.xlu0 %v1151, 64
    %v1280 = vpop.permute.xlu0 %1279
    %v1282 = vsel %vm390, %v1277, 0
    %v1285 = vsel %vm420, %v1280, 0
    %1287 = vmatprep.subr.bf16.mxu0 0
    %1288 = vmatpush1.bf16.msra.mxu0 %v1285
    %1289 = vmatprep.subr.bf16.mxu0 0
    %1290 = vmatpush1.bf16.msra.mxu0 0
    %1291 = vmatprep.subr.bf16.mxu0 0
    %1292 = vmatpush1.bf16.msra.mxu0 0
    %1293 = vmatprep.subr.bf16.mxu0 0
    %1294 = vmatpush1.bf16.msra.mxu0 0
    %1295 = vmatprep.subr.bf16.mxu0 0
    %1296 = vmatpush1.bf16.msra.mxu0 0
    %1297 = vmatprep.subr.bf16.mxu0 0
    %1298 = vmatpush1.bf16.msra.mxu0 0
    %1299 = vmatprep.subr.bf16.mxu0 0
    %1300 = vmatpush1.bf16.msra.mxu0 0
    %1301 = vmatprep.subr.bf16.mxu0 0
    %1302 = vmatpush1.bf16.msra.mxu0 0
    %1303 = vmatprep.subr.bf16.mxu0 0
    %1304 = vmatpush1.bf16.msra.mxu0 0
    %1305 = vmatprep.subr.bf16.mxu0 0
    %1306 = vmatpush1.bf16.msra.mxu0 0
    %1307 = vmatprep.subr.bf16.mxu0 0
    %1308 = vmatpush1.bf16.msra.mxu0 0
    %1309 = vmatprep.subr.bf16.mxu0 0
    %1310 = vmatpush1.bf16.msra.mxu0 0
    %1311 = vmatprep.subr.bf16.mxu0 0
    %1312 = vmatpush1.bf16.msra.mxu0 0
    %1313 = vmatprep.subr.bf16.mxu0 0
    %1314 = vmatpush1.bf16.msra.mxu0 0
    %1315 = vmatprep.subr.bf16.mxu0 0
    %1316 = vmatpush1.bf16.msra.mxu0 0
    %1317 = vmatprep.subr.bf16.mxu0 0
    %1318 = vmatpush1.bf16.msra.mxu0 0
    %1319 = vmatprep.mubr.bf16.mxu0 0
    %1320 = vmatmul.mubr.bf16.gmra.mrb[0].mxu0 %v1282
    %v1321 = vpop.f32.mrb[0].mxu0
    %v1322 = vadd.f32 0.0, %v1321
    %v1323 = vpop.f32.mrb[0].mxu0
    %v1324 = vpop.f32.mrb[0].mxu0
    %v1325 = vpop.f32.mrb[0].mxu0
    %1326 = vdwg.mxu0
    %1327 = vrot.lane.b32.xlu0 %v1152, 64
    %v1328 = vpop.permute.xlu0 %1327
    %v1330 = vsel %vm390, %v1278, 0
    %v1333 = vsel %vm420, %v1328, 0
    %1335 = vmatprep.subr.bf16.mxu0 0
    %1336 = vmatpush1.bf16.msra.mxu0 %v1333
    %1337 = vmatprep.subr.bf16.mxu0 0
    %1338 = vmatpush1.bf16.msra.mxu0 0
    %1339 = vmatprep.subr.bf16.mxu0 0
    %1340 = vmatpush1.bf16.msra.mxu0 0
    %1341 = vmatprep.subr.bf16.mxu0 0
    %1342 = vmatpush1.bf16.msra.mxu0 0
    %1343 = vmatprep.subr.bf16.mxu0 0
    %1344 = vmatpush1.bf16.msra.mxu0 0
    %1345 = vmatprep.subr.bf16.mxu0 0
    %1346 = vmatpush1.bf16.msra.mxu0 0
    %1347 = vmatprep.subr.bf16.mxu0 0
    %1348 = vmatpush1.bf16.msra.mxu0 0
    %1349 = vmatprep.subr.bf16.mxu0 0
    %1350 = vmatpush1.bf16.msra.mxu0 0
    %1351 = vmatprep.subr.bf16.mxu0 0
    %1352 = vmatpush1.bf16.msra.mxu0 0
    %1353 = vmatprep.subr.bf16.mxu0 0
    %1354 = vmatpush1.bf16.msra.mxu0 0
    %1355 = vmatprep.subr.bf16.mxu0 0
    %1356 = vmatpush1.bf16.msra.mxu0 0
    %1357 = vmatprep.subr.bf16.mxu0 0
    %1358 = vmatpush1.bf16.msra.mxu0 0
    %1359 = vmatprep.subr.bf16.mxu0 0
    %1360 = vmatpush1.bf16.msra.mxu0 0
    %1361 = vmatprep.subr.bf16.mxu0 0
    %1362 = vmatpush1.bf16.msra.mxu0 0
    %1363 = vmatprep.subr.bf16.mxu0 0
    %1364 = vmatpush1.bf16.msra.mxu0 0
    %1365 = vmatprep.subr.bf16.mxu0 0
    %1366 = vmatpush1.bf16.msra.mxu0 0
    %1367 = vmatprep.mubr.bf16.mxu0 0
    %1368 = vmatmul.mubr.bf16.gmra.mrb[0].mxu0 %v1330
    %v1369 = vpop.f32.mrb[0].mxu0
    %v1370 = vadd.f32 0.0, %v1369
    %v1371 = vpop.f32.mrb[0].mxu0
    %v1372 = vpop.f32.mrb[0].mxu0
    %v1373 = vpop.f32.mrb[0].mxu0
    %1374 = vdwg.mxu0
    %v1375 = vld [vmem:[%s1 + $0x60] sm:$0xf]
    %v1376 = vld [vmem:[%s1 + $0x64] sm:$0xf]
    %v1377 = vpack.c.bf16 %v1370, %v1322
    %1378 = vrot.lane.b32.xlu0 %v1151, 112
    %v1379 = vpop.permute.xlu0 %1378
    %1380 = vrot.lane.b32.xlu0 %v1151, 80
    %v1381 = vpop.permute.xlu0 %1380
    %v1383 = vsel %vm278, %v1379, 0
    %v1386 = vsel %vm278, %v1381, 0
    %1388 = vmatprep.subr.bf16.mxu0 0
    %1389 = vmatpush1.bf16.xpose.msra.mxu0 %v1386
    %1390 = vmatprep.subr.bf16.mxu0 0
    %1391 = vmatpush1.bf16.xpose.msra.mxu0 0
    %1392 = vmatprep.subr.bf16.mxu0 0
    %1393 = vmatpush1.bf16.xpose.msra.mxu0 0
    %1394 = vmatprep.subr.bf16.mxu0 0
    %1395 = vmatpush1.bf16.xpose.msra.mxu0 0
    %1396 = vmatprep.subr.bf16.mxu0 0
    %1397 = vmatpush1.bf16.xpose.msra.mxu0 0
    %1398 = vmatprep.subr.bf16.mxu0 0
    %1399 = vmatpush1.bf16.xpose.msra.mxu0 0
    %1400 = vmatprep.subr.bf16.mxu0 0
    %1401 = vmatpush1.bf16.xpose.msra.mxu0 0
    %1402 = vmatprep.subr.bf16.mxu0 0
    %1403 = vmatpush1.bf16.xpose.msra.mxu0 0
    %1404 = vmatprep.subr.bf16.mxu0 0
    %1405 = vmatpush1.bf16.xpose.msra.mxu0 0
    %1406 = vmatprep.subr.bf16.mxu0 0
    %1407 = vmatpush1.bf16.xpose.msra.mxu0 0
    %1408 = vmatprep.subr.bf16.mxu0 0
    %1409 = vmatpush1.bf16.xpose.msra.mxu0 0
    %1410 = vmatprep.subr.bf16.mxu0 0
    %1411 = vmatpush1.bf16.xpose.msra.mxu0 0
    %1412 = vmatprep.subr.bf16.mxu0 0
    %1413 = vmatpush1.bf16.xpose.msra.mxu0 0
    %1414 = vmatprep.subr.bf16.mxu0 0
    %1415 = vmatpush1.bf16.xpose.msra.mxu0 0
    %1416 = vmatprep.subr.bf16.mxu0 0
    %1417 = vmatpush1.bf16.xpose.msra.mxu0 0
    %1418 = vmatprep.subr.bf16.mxu0 0
    %1419 = vmatpush1.bf16.xpose.msra.mxu0 0
    %1420 = vmatprep.mubr.bf16.mxu0 0
    %1421 = vmatmul.mubr.bf16.gmra.mrb[0].mxu0 %v1383
    %v1422 = vpop.f32.mrb[0].mxu0
    %v1423 = vadd.f32 0.0, %v1422
    %v1424 = vpop.f32.mrb[0].mxu0
    %v1425 = vpop.f32.mrb[0].mxu0
    %v1426 = vpop.f32.mrb[0].mxu0
    %1427 = vdwg.mxu0
    %1428 = vrot.lane.b32.xlu0 %v1152, 112
    %v1429 = vpop.permute.xlu0 %1428
    %1430 = vrot.lane.b32.xlu0 %v1152, 80
    %v1431 = vpop.permute.xlu0 %1430
    %v1433 = vsel %vm278, %v1429, 0
    %v1436 = vsel %vm278, %v1431, 0
    %1438 = vmatprep.subr.bf16.mxu0 0
    %1439 = vmatpush1.bf16.xpose.msra.mxu0 %v1436
    %1440 = vmatprep.subr.bf16.mxu0 0
    %1441 = vmatpush1.bf16.xpose.msra.mxu0 0
    %1442 = vmatprep.subr.bf16.mxu0 0
    %1443 = vmatpush1.bf16.xpose.msra.mxu0 0
    %1444 = vmatprep.subr.bf16.mxu0 0
    %1445 = vmatpush1.bf16.xpose.msra.mxu0 0
    %1446 = vmatprep.subr.bf16.mxu0 0
    %1447 = vmatpush1.bf16.xpose.msra.mxu0 0
    %1448 = vmatprep.subr.bf16.mxu0 0
    %1449 = vmatpush1.bf16.xpose.msra.mxu0 0
    %1450 = vmatprep.subr.bf16.mxu0 0
    %1451 = vmatpush1.bf16.xpose.msra.mxu0 0
    %1452 = vmatprep.subr.bf16.mxu0 0
    %1453 = vmatpush1.bf16.xpose.msra.mxu0 0
    %1454 = vmatprep.subr.bf16.mxu0 0
    %1455 = vmatpush1.bf16.xpose.msra.mxu0 0
    %1456 = vmatprep.subr.bf16.mxu0 0
    %1457 = vmatpush1.bf16.xpose.msra.mxu0 0
    %1458 = vmatprep.subr.bf16.mxu0 0
    %1459 = vmatpush1.bf16.xpose.msra.mxu0 0
    %1460 = vmatprep.subr.bf16.mxu0 0
    %1461 = vmatpush1.bf16.xpose.msra.mxu0 0
    %1462 = vmatprep.subr.bf16.mxu0 0
    %1463 = vmatpush1.bf16.xpose.msra.mxu0 0
    %1464 = vmatprep.subr.bf16.mxu0 0
    %1465 = vmatpush1.bf16.xpose.msra.mxu0 0
    %1466 = vmatprep.subr.bf16.mxu0 0
    %1467 = vmatpush1.bf16.xpose.msra.mxu0 0
    %1468 = vmatprep.subr.bf16.mxu0 0
    %1469 = vmatpush1.bf16.xpose.msra.mxu0 0
    %1470 = vmatprep.mubr.bf16.mxu0 0
    %1471 = vmatmul.mubr.bf16.gmra.mrb[0].mxu0 %v1433
    %v1472 = vpop.f32.mrb[0].mxu0
    %v1473 = vadd.f32 0.0, %v1472
    %v1474 = vpop.f32.mrb[0].mxu0
    %v1475 = vpop.f32.mrb[0].mxu0
    %v1476 = vpop.f32.mrb[0].mxu0
    %1477 = vdwg.mxu0
    %v1478 = vmul.f32 %v1423, 0.25
    %v1479 = vmul.f32 %v1473, 0.25
    %v1480 = vsel %vm386, %v1478, -1000000.0
    %v1481 = vsel %vm387, %v1479, -1000000.0
    %v1482 = vsel %vm390, %v1480, -inf
    %1483 = vmax.xlane.f32.xlu0 %v1482
    %v1484 = vpop.xlane.xlu0 %1483
    %v1485 = vsel %vm390, %v1481, -inf
    %1486 = vmax.xlane.f32.xlu0 %v1485
    %v1487 = vpop.xlane.xlu0 %1486
    %v1488 = vsub.f32 %v1480, %v1484
    %v1489 = vsub.f32 %v1481, %v1487
    %v1490 = vmul.f32 %v1488, 1.442695
    %v1491 = vpow.pop %v1490
    %v1492 = vmul.f32 %v1489, 1.442695
    %v1493 = vpow.pop %v1492
    %v1494 = vsel %vm390, %v1491, 0.0
    %1495 = vadd.xlane.f32.xlu0 %v1494
    %v1496 = vpop.xlane.xlu0 %1495
    %v1497 = vsel %vm390, %v1493, 0.0
    %1498 = vadd.xlane.f32.xlu0 %v1497
    %v1499 = vpop.xlane.xlu0 %1498
    %v1500 = vrcp.pop %v1496
    %v1501 = vrcp.pop %v1499
    %v1502 = vmul.f32 %v1491, %v1500
    %v1503 = vmul.f32 %v1493, %v1501
    %v1504 = vpack.c.bf16 %v1502, %v1502
    %v1505 = vpack.c.bf16 %v1503, %v1503
    %1506 = vrot.lane.b32.xlu0 %v1151, 48
    %v1507 = vpop.permute.xlu0 %1506
    %v1509 = vsel %vm390, %v1504, 0
    %v1512 = vsel %vm420, %v1507, 0
    %1514 = vmatprep.subr.bf16.mxu0 0
    %1515 = vmatpush1.bf16.msra.mxu0 %v1512
    %1516 = vmatprep.subr.bf16.mxu0 0
    %1517 = vmatpush1.bf16.msra.mxu0 0
    %1518 = vmatprep.subr.bf16.mxu0 0
    %1519 = vmatpush1.bf16.msra.mxu0 0
    %1520 = vmatprep.subr.bf16.mxu0 0
    %1521 = vmatpush1.bf16.msra.mxu0 0
    %1522 = vmatprep.subr.bf16.mxu0 0
    %1523 = vmatpush1.bf16.msra.mxu0 0
    %1524 = vmatprep.subr.bf16.mxu0 0
    %1525 = vmatpush1.bf16.msra.mxu0 0
    %1526 = vmatprep.subr.bf16.mxu0 0
    %1527 = vmatpush1.bf16.msra.mxu0 0
    %1528 = vmatprep.subr.bf16.mxu0 0
    %1529 = vmatpush1.bf16.msra.mxu0 0
    %1530 = vmatprep.subr.bf16.mxu0 0
    %1531 = vmatpush1.bf16.msra.mxu0 0
    %1532 = vmatprep.subr.bf16.mxu0 0
    %1533 = vmatpush1.bf16.msra.mxu0 0
    %1534 = vmatprep.subr.bf16.mxu0 0
    %1535 = vmatpush1.bf16.msra.mxu0 0
    %1536 = vmatprep.subr.bf16.mxu0 0
    %1537 = vmatpush1.bf16.msra.mxu0 0
    %1538 = vmatprep.subr.bf16.mxu0 0
    %1539 = vmatpush1.bf16.msra.mxu0 0
    %1540 = vmatprep.subr.bf16.mxu0 0
    %1541 = vmatpush1.bf16.msra.mxu0 0
    %1542 = vmatprep.subr.bf16.mxu0 0
    %1543 = vmatpush1.bf16.msra.mxu0 0
    %1544 = vmatprep.subr.bf16.mxu0 0
    %1545 = vmatpush1.bf16.msra.mxu0 0
    %1546 = vmatprep.mubr.bf16.mxu0 0
    %1547 = vmatmul.mubr.bf16.gmra.mrb[0].mxu0 %v1509
    %v1548 = vpop.f32.mrb[0].mxu0
    %v1549 = vadd.f32 0.0, %v1548
    %v1550 = vpop.f32.mrb[0].mxu0
    %v1551 = vpop.f32.mrb[0].mxu0
    %v1552 = vpop.f32.mrb[0].mxu0
    %1553 = vdwg.mxu0
    %1554 = vrot.lane.b32.xlu0 %v1152, 48
    %v1555 = vpop.permute.xlu0 %1554
    %v1557 = vsel %vm390, %v1505, 0
    %v1560 = vsel %vm420, %v1555, 0
    %1562 = vmatprep.subr.bf16.mxu0 0
    %1563 = vmatpush1.bf16.msra.mxu0 %v1560
    %1564 = vmatprep.subr.bf16.mxu0 0
    %1565 = vmatpush1.bf16.msra.mxu0 0
    %1566 = vmatprep.subr.bf16.mxu0 0
    %1567 = vmatpush1.bf16.msra.mxu0 0
    %1568 = vmatprep.subr.bf16.mxu0 0
    %1569 = vmatpush1.bf16.msra.mxu0 0
    %1570 = vmatprep.subr.bf16.mxu0 0
    %1571 = vmatpush1.bf16.msra.mxu0 0
    %1572 = vmatprep.subr.bf16.mxu0 0
    %1573 = vmatpush1.bf16.msra.mxu0 0
    %1574 = vmatprep.subr.bf16.mxu0 0
    %1575 = vmatpush1.bf16.msra.mxu0 0
    %1576 = vmatprep.subr.bf16.mxu0 0
    %1577 = vmatpush1.bf16.msra.mxu0 0
    %1578 = vmatprep.subr.bf16.mxu0 0
    %1579 = vmatpush1.bf16.msra.mxu0 0
    %1580 = vmatprep.subr.bf16.mxu0 0
    %1581 = vmatpush1.bf16.msra.mxu0 0
    %1582 = vmatprep.subr.bf16.mxu0 0
    %1583 = vmatpush1.bf16.msra.mxu0 0
    %1584 = vmatprep.subr.bf16.mxu0 0
    %1585 = vmatpush1.bf16.msra.mxu0 0
    %1586 = vmatprep.subr.bf16.mxu0 0
    %1587 = vmatpush1.bf16.msra.mxu0 0
    %1588 = vmatprep.subr.bf16.mxu0 0
    %1589 = vmatpush1.bf16.msra.mxu0 0
    %1590 = vmatprep.subr.bf16.mxu0 0
    %1591 = vmatpush1.bf16.msra.mxu0 0
    %1592 = vmatprep.subr.bf16.mxu0 0
    %1593 = vmatpush1.bf16.msra.mxu0 0
    %1594 = vmatprep.mubr.bf16.mxu0 0
    %1595 = vmatmul.mubr.bf16.gmra.mrb[0].mxu0 %v1557
    %v1596 = vpop.f32.mrb[0].mxu0
    %v1597 = vadd.f32 0.0, %v1596
    %v1598 = vpop.f32.mrb[0].mxu0
    %v1599 = vpop.f32.mrb[0].mxu0
    %v1600 = vpop.f32.mrb[0].mxu0
    %1601 = vdwg.mxu0
    %v1602 = vld [vmem:[%s1 + $0x68] sm:$0xf]
    %v1603 = vld [vmem:[%s1 + $0x6c] sm:$0xf]
    %v1604 = vpack.c.bf16 %v1597, %v1549
    %v1607 = vunpack.c.l.b16 %v1602
    %v1608 = vunpack.c.l.b16 %v1603
    %v1609 = vpack.c.b16 %v1608, %v1607
    %v1612 = vsel %vm278, %v1604, 0
    %1614 = vmatprep.subr.bf16.mxu0 0
    %1615 = vmatpush1.bf16.msra.mxu0 %v1609
    %1616 = vmatprep.subr.bf16.mxu0 0
    %1617 = vmatpush1.bf16.msra.mxu0 0
    %1618 = vmatprep.subr.bf16.mxu0 0
    %1619 = vmatpush1.bf16.msra.mxu0 0
    %1620 = vmatprep.subr.bf16.mxu0 0
    %1621 = vmatpush1.bf16.msra.mxu0 0
    %1622 = vmatprep.subr.bf16.mxu0 0
    %1623 = vmatpush1.bf16.msra.mxu0 0
    %1624 = vmatprep.subr.bf16.mxu0 0
    %1625 = vmatpush1.bf16.msra.mxu0 0
    %1626 = vmatprep.subr.bf16.mxu0 0
    %1627 = vmatpush1.bf16.msra.mxu0 0
    %1628 = vmatprep.subr.bf16.mxu0 0
    %1629 = vmatpush1.bf16.msra.mxu0 0
    %1630 = vmatprep.subr.bf16.mxu0 0
    %1631 = vmatpush1.bf16.msra.mxu0 0
    %1632 = vmatprep.subr.bf16.mxu0 0
    %1633 = vmatpush1.bf16.msra.mxu0 0
    %1634 = vmatprep.subr.bf16.mxu0 0
    %1635 = vmatpush1.bf16.msra.mxu0 0
    %1636 = vmatprep.subr.bf16.mxu0 0
    %1637 = vmatpush1.bf16.msra.mxu0 0
    %1638 = vmatprep.subr.bf16.mxu0 0
    %1639 = vmatpush1.bf16.msra.mxu0 0
    %1640 = vmatprep.subr.bf16.mxu0 0
    %1641 = vmatpush1.bf16.msra.mxu0 0
    %1642 = vmatprep.subr.bf16.mxu0 0
    %1643 = vmatpush1.bf16.msra.mxu0 0
    %1644 = vmatprep.subr.bf16.mxu0 0
    %1645 = vmatpush1.bf16.msra.mxu0 0
    %1646 = vmatprep.mubr.bf16.mxu0 0
    %1647 = vmatmul.mubr.bf16.gmra.mrb[0].mxu0 %v1612
    %v1648 = vpop.f32.mrb[0].mxu0
    %v1649 = vadd.f32 0.0, %v1648
    %v1650 = vpop.f32.mrb[0].mxu0
    %v1651 = vpop.f32.mrb[0].mxu0
    %v1652 = vadd.f32 0.0, %v1651
    %v1653 = vpop.f32.mrb[0].mxu0
    %1654 = vdwg.mxu0
    %v1657 = vunpack.c.l.b16 %v1375
    %v1658 = vunpack.c.l.b16 %v1376
    %v1659 = vpack.c.b16 %v1658, %v1657
    %v1662 = vsel %vm278, %v1377, 0
    %1664 = vmatprep.subr.bf16.mxu0 0
    %1665 = vmatpush1.bf16.msra.mxu0 %v1659
    %1666 = vmatprep.subr.bf16.mxu0 0
    %1667 = vmatpush1.bf16.msra.mxu0 0
    %1668 = vmatprep.subr.bf16.mxu0 0
    %1669 = vmatpush1.bf16.msra.mxu0 0
    %1670 = vmatprep.subr.bf16.mxu0 0
    %1671 = vmatpush1.bf16.msra.mxu0 0
    %1672 = vmatprep.subr.bf16.mxu0 0
    %1673 = vmatpush1.bf16.msra.mxu0 0
    %1674 = vmatprep.subr.bf16.mxu0 0
    %1675 = vmatpush1.bf16.msra.mxu0 0
    %1676 = vmatprep.subr.bf16.mxu0 0
    %1677 = vmatpush1.bf16.msra.mxu0 0
    %1678 = vmatprep.subr.bf16.mxu0 0
    %1679 = vmatpush1.bf16.msra.mxu0 0
    %1680 = vmatprep.subr.bf16.mxu0 0
    %1681 = vmatpush1.bf16.msra.mxu0 0
    %1682 = vmatprep.subr.bf16.mxu0 0
    %1683 = vmatpush1.bf16.msra.mxu0 0
    %1684 = vmatprep.subr.bf16.mxu0 0
    %1685 = vmatpush1.bf16.msra.mxu0 0
    %1686 = vmatprep.subr.bf16.mxu0 0
    %1687 = vmatpush1.bf16.msra.mxu0 0
    %1688 = vmatprep.subr.bf16.mxu0 0
    %1689 = vmatpush1.bf16.msra.mxu0 0
    %1690 = vmatprep.subr.bf16.mxu0 0
    %1691 = vmatpush1.bf16.msra.mxu0 0
    %1692 = vmatprep.subr.bf16.mxu0 0
    %1693 = vmatpush1.bf16.msra.mxu0 0
    %1694 = vmatprep.subr.bf16.mxu0 0
    %1695 = vmatpush1.bf16.msra.mxu0 0
    %1696 = vmatprep.mubr.bf16.mxu0 0
    %1697 = vmatmul.mubr.bf16.gmra.mrb[0].mxu0 %v1662
    %v1698 = vpop.f32.mrb[0].mxu0
    %v1699 = vadd.f32 %v1649, %v1698
    %v1700 = vpop.f32.mrb[0].mxu0
    %v1701 = vpop.f32.mrb[0].mxu0
    %v1702 = vadd.f32 %v1652, %v1701
    %v1703 = vpop.f32.mrb[0].mxu0
    %1704 = vdwg.mxu0
    %v1705 = vld [vmem:[#allocation2 + $0x9] sm:$0x1]
    %v1706 = vlaneseq
    %v1707 = vshrl.u32 %v1706, 7
    %v1708 = vsub.s32 0, %v1707
    %v1709 = vrot.slane %v1705, %v1708
    %v1710 = vadd.f32 %v1699, %v1709
    %v1711 = vadd.f32 %v1702, %v1709
    %v1712 = vadd.f32 %v1710, %v1083
    %v1713 = vadd.f32 %v1711, %v1084
    %v1714 = vld [vmem:[#allocation2 + $0xa] sm:$0x1]
    %v1715 = vld [vmem:[#allocation2 + $0xb] sm:$0x1]
    %v1716 = vsel %vm228, %v1712, 0.0
    %1717 = vadd.xlane.f32.xlu0 %v1716
    %v1718 = vpop.xlane.xlu0 %1717
    %v1719 = vsel %vm228, %v1713, 0.0
    %1720 = vadd.xlane.f32.xlu0 %v1719
    %v1721 = vpop.xlane.xlu0 %1720
    %v1722 = vmul.f32 %v1718, %v859
    %v1723 = vmul.f32 %v1721, %v859
    %v1724 = vsub.f32 %v1712, %v1722
    %v1725 = vsub.f32 %v1713, %v1723
    %v1726 = vmul.f32 %v1724, %v1724
    %v1727 = vmul.f32 %v1725, %v1725
    %v1728 = vsel %vm228, %v1726, 0.0
    %1729 = vadd.xlane.f32.xlu0 %v1728
    %v1730 = vpop.xlane.xlu0 %1729
    %v1731 = vsel %vm228, %v1727, 0.0
    %1732 = vadd.xlane.f32.xlu0 %v1731
    %v1733 = vpop.xlane.xlu0 %1732
    %v1734 = vmul.f32 %v1730, %v859
    %v1735 = vmul.f32 %v1733, %v859
    %v1736 = vadd.f32 %v1734, 1e-05
    %v1737 = vadd.f32 %v1735, 1e-05
    %v1738 = vrsqrt.pop %v1736
    %v1739 = vrsqrt.pop %v1737
    %v1740 = vmul.f32 %v1724, %v1738
    %v1741 = vmul.f32 %v1725, %v1739
    %v1742 = vlaneseq
    %v1743 = vshrl.u32 %v1742, 7
    %v1744 = vsub.s32 0, %v1743
    %v1745 = vrot.slane %v1714, %v1744
    %v1746 = vmul.f32 %v1740, %v1745
    %v1747 = vmul.f32 %v1741, %v1745
    %v1748 = vlaneseq
    %v1749 = vshrl.u32 %v1748, 7
    %v1750 = vsub.s32 0, %v1749
    %v1751 = vrot.slane %v1715, %v1750
    %v1752 = vadd.f32 %v1746, %v1751
    %v1753 = vadd.f32 %v1747, %v1751
    %v1754 = vld [vmem:[%s1 + $0x70] sm:$0xf]
    %v1755 = vld [vmem:[%s1 + $0x74] sm:$0xf]
    %v1756 = vld [vmem:[%s1 + $0x78] sm:$0xf]
    %v1757 = vld [vmem:[%s1 + $0x7c] sm:$0xf]
    %v1758 = vpack.c.bf16 %v1753, %v1752
    %v1759 = vld [vmem:[#allocation2 + $0xc] sm:$0x1]
    %v1760 = vlaneseq
    %v1761 = vshrl.u32 %v1760, 7
    %v1762 = vsub.s32 0, %v1761
    %v1763 = vrot.slane %v1759, %v1762
    %v1768 = vunpack.c.l.b16 %v1754
    %v1769 = vunpack.c.l.b16 %v1755
    %v1770 = vunpack.c.l.b16 %v1756
    %v1771 = vunpack.c.l.b16 %v1757
    %v1772 = vpack.c.b16 %v1769, %v1768
    %v1773 = vpack.c.b16 %v1771, %v1770
    %v1777 = vsel %vm228, %v1758, 0
    %1779 = vmatprep.subr.bf16.mxu0 0
    %1780 = vmatpush1.bf16.msra.mxu0 %v1772
    %1781 = vmatprep.subr.bf16.mxu0 0
    %1782 = vmatpush1.bf16.msra.mxu0 %v1773
    %1783 = vmatprep.subr.bf16.mxu0 0
    %1784 = vmatpush1.bf16.msra.mxu0 0
    %1785 = vmatprep.subr.bf16.mxu0 0
    %1786 = vmatpush1.bf16.msra.mxu0 0
    %1787 = vmatprep.subr.bf16.mxu0 0
    %1788 = vmatpush1.bf16.msra.mxu0 0
    %1789 = vmatprep.subr.bf16.mxu0 0
    %1790 = vmatpush1.bf16.msra.mxu0 0
    %1791 = vmatprep.subr.bf16.mxu0 0
    %1792 = vmatpush1.bf16.msra.mxu0 0
    %1793 = vmatprep.subr.bf16.mxu0 0
    %1794 = vmatpush1.bf16.msra.mxu0 0
    %1795 = vmatprep.subr.bf16.mxu0 0
    %1796 = vmatpush1.bf16.msra.mxu0 0
    %1797 = vmatprep.subr.bf16.mxu0 0
    %1798 = vmatpush1.bf16.msra.mxu0 0
    %1799 = vmatprep.subr.bf16.mxu0 0
    %1800 = vmatpush1.bf16.msra.mxu0 0
    %1801 = vmatprep.subr.bf16.mxu0 0
    %1802 = vmatpush1.bf16.msra.mxu0 0
    %1803 = vmatprep.subr.bf16.mxu0 0
    %1804 = vmatpush1.bf16.msra.mxu0 0
    %1805 = vmatprep.subr.bf16.mxu0 0
    %1806 = vmatpush1.bf16.msra.mxu0 0
    %1807 = vmatprep.subr.bf16.mxu0 0
    %1808 = vmatpush1.bf16.msra.mxu0 0
    %1809 = vmatprep.subr.bf16.mxu0 0
    %1810 = vmatpush1.bf16.msra.mxu0 0
    %1811 = vmatprep.mubr.bf16.mxu0 0
    %1812 = vmatmul.mubr.bf16.gmra.mrb[0].mxu0 %v1777
    %v1813 = vpop.f32.mrb[0].mxu0
    %v1814 = vadd.f32 %v1763, %v1813
    %v1815 = vpop.f32.mrb[0].mxu0
    %v1816 = vpop.f32.mrb[0].mxu0
    %v1817 = vadd.f32 %v1763, %v1816
    %v1818 = vpop.f32.mrb[0].mxu0
    %1819 = vdwg.mxu0
    %v1820 = vmax.f32 %v1814, 0.0
    %v1821 = vmax.f32 %v1817, 0.0
    %v1822 = vld [vmem:[%s1 + $0x80] sm:$0xf]
    %v1823 = vld [vmem:[%s1 + $0x84] sm:$0xf]
    %v1824 = vld [vmem:[%s1 + $0x88] sm:$0xf]
    %v1825 = vld [vmem:[%s1 + $0x8c] sm:$0xf]
    %v1826 = vld [vmem:[%s1 + $0x90] sm:$0xf]
    %v1827 = vld [vmem:[%s1 + $0x94] sm:$0xf]
    %v1828 = vld [vmem:[%s1 + $0x98] sm:$0xf]
    %v1829 = vld [vmem:[%s1 + $0x9c] sm:$0xf]
    %v1830 = vpack.c.bf16 %v1821, %v1820
    %v1831 = vld [vmem:[#allocation2 + $0xd] sm:$0x1]
    %v1832 = vlaneseq
    %v1833 = vshrl.u32 %v1832, 7
    %v1834 = vsub.s32 0, %v1833
    %v1835 = vrot.slane %v1831, %v1834
    %v1844 = vunpack.c.l.b16 %v1822
    %v1845 = vunpack.c.l.b16 %v1823
    %v1846 = vunpack.c.l.b16 %v1824
    %v1847 = vunpack.c.l.b16 %v1825
    %v1848 = vunpack.c.l.b16 %v1826
    %v1849 = vunpack.c.l.b16 %v1827
    %v1850 = vunpack.c.l.b16 %v1828
    %v1851 = vunpack.c.l.b16 %v1829
    %v1852 = vpack.c.b16 %v1845, %v1844
    %v1853 = vpack.c.b16 %v1847, %v1846
    %v1854 = vpack.c.b16 %v1849, %v1848
    %v1855 = vpack.c.b16 %v1851, %v1850
    %v1861 = vsel %vm998, %v1830, 0
    %1863 = vmatprep.subr.bf16.mxu0 0
    %1864 = vmatpush1.bf16.msra.mxu0 %v1852
    %1865 = vmatprep.subr.bf16.mxu0 0
    %1866 = vmatpush1.bf16.msra.mxu0 %v1853
    %1867 = vmatprep.subr.bf16.mxu0 0
    %1868 = vmatpush1.bf16.msra.mxu0 %v1854
    %1869 = vmatprep.subr.bf16.mxu0 0
    %1870 = vmatpush1.bf16.msra.mxu0 %v1855
    %1871 = vmatprep.subr.bf16.mxu0 0
    %1872 = vmatpush1.bf16.msra.mxu0 0
    %1873 = vmatprep.subr.bf16.mxu0 0
    %1874 = vmatpush1.bf16.msra.mxu0 0
    %1875 = vmatprep.subr.bf16.mxu0 0
    %1876 = vmatpush1.bf16.msra.mxu0 0
    %1877 = vmatprep.subr.bf16.mxu0 0
    %1878 = vmatpush1.bf16.msra.mxu0 0
    %1879 = vmatprep.subr.bf16.mxu0 0
    %1880 = vmatpush1.bf16.msra.mxu0 0
    %1881 = vmatprep.subr.bf16.mxu0 0
    %1882 = vmatpush1.bf16.msra.mxu0 0
    %1883 = vmatprep.subr.bf16.mxu0 0
    %1884 = vmatpush1.bf16.msra.mxu0 0
    %1885 = vmatprep.subr.bf16.mxu0 0
    %1886 = vmatpush1.bf16.msra.mxu0 0
    %1887 = vmatprep.subr.bf16.mxu0 0
    %1888 = vmatpush1.bf16.msra.mxu0 0
    %1889 = vmatprep.subr.bf16.mxu0 0
    %1890 = vmatpush1.bf16.msra.mxu0 0
    %1891 = vmatprep.subr.bf16.mxu0 0
    %1892 = vmatpush1.bf16.msra.mxu0 0
    %1893 = vmatprep.subr.bf16.mxu0 0
    %1894 = vmatpush1.bf16.msra.mxu0 0
    %1895 = vmatprep.mubr.bf16.mxu0 0
    %1896 = vmatmul.mubr.bf16.gmra.mrb[0].mxu0 %v1861
    %v1897 = vpop.f32.mrb[0].mxu0
    %v1898 = vadd.f32 %v1835, %v1897
    %v1899 = vpop.f32.mrb[0].mxu0
    %v1900 = vpop.f32.mrb[0].mxu0
    %v1901 = vadd.f32 %v1835, %v1900
    %v1902 = vpop.f32.mrb[0].mxu0
    %1903 = vdwg.mxu0
    %v1904 = vadd.f32 %v1898, %v1752
    %v1905 = vadd.f32 %v1901, %v1753
    %v1906 = vld [vmem:[#allocation2 + $0xe] sm:$0x1]
    %v1907 = vld [vmem:[#allocation2 + $0xf] sm:$0x1]
    %v1908 = vsel %vm228, %v1904, 0.0
    %1909 = vadd.xlane.f32.xlu0 %v1908
    %v1910 = vpop.xlane.xlu0 %1909
    %v1911 = vsel %vm228, %v1905, 0.0
    %1912 = vadd.xlane.f32.xlu0 %v1911
    %v1913 = vpop.xlane.xlu0 %1912
    %v1914 = vmul.f32 %v1910, %v859
    %v1915 = vmul.f32 %v1913, %v859
    %v1916 = vsub.f32 %v1904, %v1914
    %v1917 = vsub.f32 %v1905, %v1915
    %v1918 = vmul.f32 %v1916, %v1916
    %v1919 = vmul.f32 %v1917, %v1917
    %v1920 = vsel %vm228, %v1918, 0.0
    %1921 = vadd.xlane.f32.xlu0 %v1920
    %v1922 = vpop.xlane.xlu0 %1921
    %v1923 = vsel %vm228, %v1919, 0.0
    %1924 = vadd.xlane.f32.xlu0 %v1923
    %v1925 = vpop.xlane.xlu0 %1924
    %v1926 = vmul.f32 %v1922, %v859
    %v1927 = vmul.f32 %v1925, %v859
    %v1928 = vadd.f32 %v1926, 1e-05
    %v1929 = vadd.f32 %v1927, 1e-05
    %v1930 = vrsqrt.pop %v1928
    %v1931 = vrsqrt.pop %v1929
    %v1932 = vmul.f32 %v1916, %v1930
    %v1933 = vmul.f32 %v1917, %v1931
    %v1934 = vlaneseq
    %v1935 = vshrl.u32 %v1934, 7
    %v1936 = vsub.s32 0, %v1935
    %v1937 = vrot.slane %v1906, %v1936
    %v1938 = vmul.f32 %v1932, %v1937
    %v1939 = vmul.f32 %v1933, %v1937
    %v1940 = vlaneseq
    %v1941 = vshrl.u32 %v1940, 7
    %v1942 = vsub.s32 0, %v1941
    %v1943 = vrot.slane %v1907, %v1942
    %v1944 = vadd.f32 %v1938, %v1943
    %v1945 = vadd.f32 %v1939, %v1943
    %1946 = vst.msk [vmem:[%s3] sm:$0xff] %vm228, %v1944
    %1947 = vst.msk [vmem:[%s3 + $0x8] sm:$0xff] %vm228, %v1945
    %v1948 = vld [vmem:[%s1 + $0xc0] sm:$0xf]
    %v1949 = vld [vmem:[%s1 + $0xc4] sm:$0xf]
    %v1950 = vld [vmem:[%s1 + $0xc8] sm:$0xf]
    %v1951 = vld [vmem:[%s1 + $0xcc] sm:$0xf]
    %v1952 = vpack.c.bf16 %v1944, %v1944
    %v1953 = vpack.c.bf16 %v1945, %v1945
    %v1954 = vld [vmem:[#allocation2 + $0x14] sm:$0x1]
    %v1955 = vlaneseq
    %v1956 = vshrl.u32 %v1955, 7
    %v1957 = vsub.s32 0, %v1956
    %v1958 = vrot.slane %v1954, %v1957
    %v1961 = vunpack.c.l.b16 %v1952
    %v1962 = vunpack.c.l.b16 %v1953
    %v1963 = vrot.slane %v1962, 7
    %vm1964 = vcmask 1041409
    %v1965 = vsel %vm1964, %v1963, %v1961
    %v1966 = vpack.c.b16 %v1965, %v1965
    %v1971 = vunpack.c.l.b16 %v1948
    %v1972 = vunpack.c.l.b16 %v1949
    %v1973 = vunpack.c.l.b16 %v1950
    %v1974 = vunpack.c.l.b16 %v1951
    %v1975 = vpack.c.b16 %v1972, %v1971
    %v1976 = vpack.c.b16 %v1974, %v1973
    %v1980 = vsel %vm228, %v1966, 0
    %1982 = vmatprep.subr.bf16.mxu0 0
    %1983 = vmatpush1.bf16.msra.mxu0 %v1975
    %1984 = vmatprep.subr.bf16.mxu0 0
    %1985 = vmatpush1.bf16.msra.mxu0 %v1976
    %1986 = vmatprep.subr.bf16.mxu0 0
    %1987 = vmatpush1.bf16.msra.mxu0 0
    %1988 = vmatprep.subr.bf16.mxu0 0
    %1989 = vmatpush1.bf16.msra.mxu0 0
    %1990 = vmatprep.subr.bf16.mxu0 0
    %1991 = vmatpush1.bf16.msra.mxu0 0
    %1992 = vmatprep.subr.bf16.mxu0 0
    %1993 = vmatpush1.bf16.msra.mxu0 0
    %1994 = vmatprep.subr.bf16.mxu0 0
    %1995 = vmatpush1.bf16.msra.mxu0 0
    %1996 = vmatprep.subr.bf16.mxu0 0
    %1997 = vmatpush1.bf16.msra.mxu0 0
    %1998 = vmatprep.subr.bf16.mxu0 0
    %1999 = vmatpush1.bf16.msra.mxu0 0
    %2000 = vmatprep.subr.bf16.mxu0 0
    %2001 = vmatpush1.bf16.msra.mxu0 0
    %2002 = vmatprep.subr.bf16.mxu0 0
    %2003 = vmatpush1.bf16.msra.mxu0 0
    %2004 = vmatprep.subr.bf16.mxu0 0
    %2005 = vmatpush1.bf16.msra.mxu0 0
    %2006 = vmatprep.subr.bf16.mxu0 0
    %2007 = vmatpush1.bf16.msra.mxu0 0
    %2008 = vmatprep.subr.bf16.mxu0 0
    %2009 = vmatpush1.bf16.msra.mxu0 0
    %2010 = vmatprep.subr.bf16.mxu0 0
    %2011 = vmatpush1.bf16.msra.mxu0 0
    %2012 = vmatprep.subr.bf16.mxu0 0
    %2013 = vmatpush1.bf16.msra.mxu0 0
    %2014 = vmatprep.mubr.bf16.mxu0 0
    %2015 = vmatmul.mubr.bf16.gmra.mrb[0].mxu0 %v1980
    %v2016 = vpop.f32.mrb[0].mxu0
    %v2017 = vadd.f32 %v1958, %v2016
    %v2018 = vpop.f32.mrb[0].mxu0
    %v2019 = vpop.f32.mrb[0].mxu0
    %v2020 = vpop.f32.mrb[0].mxu0
    %2021 = vdwg.mxu0
    %2022 = vst [vmem:[%s3 + $0x18] sm:$0x3] %v2017
    %2023 = vset.pattern.permute.xlu0 2
    %2024 = vperm.xlu0 %2023, %v33
    %v2025 = vpop.permute.xlu0 %2024
    %vm2027 = vcmp.eq.f32.partialorder %v2025, %v37
    %v2028 = vsel %vm2027, 1, 0
    %v2029 = vcvt.s32.f32 %v2028
    %v2031 = vsel %vm278, %v2029, 0
    %2033 = vmatprep.subr.mxu0 0.0
    %2034 = vmatpush1.msra.mxu0 %v1944
    %2035 = vmatprep.subr.mxu0 0.0
    %2036 = vmatpush1.msra.mxu0 %v1945
    %2037 = vmatprep.subr.mxu0 0.0
    %2038 = vmatpush1.msra.mxu0 0.0
    %2039 = vmatprep.subr.mxu0 0.0
    %2040 = vmatpush1.msra.mxu0 0.0
    %2041 = vmatprep.subr.mxu0 0.0
    %2042 = vmatpush1.msra.mxu0 0.0
    %2043 = vmatprep.subr.mxu0 0.0
    %2044 = vmatpush1.msra.mxu0 0.0
    %2045 = vmatprep.subr.mxu0 0.0
    %2046 = vmatpush1.msra.mxu0 0.0
    %2047 = vmatprep.subr.mxu0 0.0
    %2048 = vmatpush1.msra.mxu0 0.0
    %2049 = vmatprep.subr.mxu0 0.0
    %2050 = vmatpush1.msra.mxu0 0.0
    %2051 = vmatprep.subr.mxu0 0.0
    %2052 = vmatpush1.msra.mxu0 0.0
    %2053 = vmatprep.subr.mxu0 0.0
    %2054 = vmatpush1.msra.mxu0 0.0
    %2055 = vmatprep.subr.mxu0 0.0
    %2056 = vmatpush1.msra.mxu0 0.0
    %2057 = vmatprep.subr.mxu0 0.0
    %2058 = vmatpush1.msra.mxu0 0.0
    %2059 = vmatprep.subr.mxu0 0.0
    %2060 = vmatpush1.msra.mxu0 0.0
    %2061 = vmatprep.subr.mxu0 0.0
    %2062 = vmatpush1.msra.mxu0 0.0
    %2063 = vmatprep.subr.mxu0 0.0
    %2064 = vmatpush1.msra.mxu0 0.0
    %2065 = vmatprep.subr.mxu0 0.0
    %2066 = vmatpush1.msra.mxu0 0.0
    %2067 = vmatprep.subr.mxu0 0.0
    %2068 = vmatpush1.msra.mxu0 0.0
    %2069 = vmatprep.subr.mxu0 0.0
    %2070 = vmatpush1.msra.mxu0 0.0
    %2071 = vmatprep.subr.mxu0 0.0
    %2072 = vmatpush1.msra.mxu0 0.0
    %2073 = vmatprep.subr.mxu0 0.0
    %2074 = vmatpush1.msra.mxu0 0.0
    %2075 = vmatprep.subr.mxu0 0.0
    %2076 = vmatpush1.msra.mxu0 0.0
    %2077 = vmatprep.subr.mxu0 0.0
    %2078 = vmatpush1.msra.mxu0 0.0
    %2079 = vmatprep.subr.mxu0 0.0
    %2080 = vmatpush1.msra.mxu0 0.0
    %2081 = vmatprep.subr.mxu0 0.0
    %2082 = vmatpush1.msra.mxu0 0.0
    %2083 = vmatprep.subr.mxu0 0.0
    %2084 = vmatpush1.msra.mxu0 0.0
    %2085 = vmatprep.subr.mxu0 0.0
    %2086 = vmatpush1.msra.mxu0 0.0
    %2087 = vmatprep.subr.mxu0 0.0
    %2088 = vmatpush1.msra.mxu0 0.0
    %2089 = vmatprep.subr.mxu0 0.0
    %2090 = vmatpush1.msra.mxu0 0.0
    %2091 = vmatprep.subr.mxu0 0.0
    %2092 = vmatpush1.msra.mxu0 0.0
    %2093 = vmatprep.subr.mxu0 0.0
    %2094 = vmatpush1.msra.mxu0 0.0
    %2095 = vmatprep.subr.mxu0 0.0
    %2096 = vmatpush1.msra.mxu0 0.0
    %2097 = vmatprep.mubr.f32.mxu0 0.0
    %2098 = vmatmul.mubr.f32.gmra.mrb[0].mxu0 %v2031
    %v2099 = vpop.f32.mrb[0].mxu0
    %v2100 = vadd.f32 0.0, %v2099
    %v2101 = vpop.f32.mrb[0].mxu0
    %2102 = vdwg.mxu0
    %v2103 = vld [vmem:[%s1 + $0xa0] sm:$0xf]
    %v2104 = vld [vmem:[%s1 + $0xa4] sm:$0xf]
    %v2105 = vld [vmem:[%s1 + $0xa8] sm:$0xf]
    %v2106 = vld [vmem:[%s1 + $0xac] sm:$0xf]
    %v2107 = vpack.c.bf16 %v2100, %v2100
    %v2108 = vld [vmem:[#allocation2 + $0x10] sm:$0x1]
    %v2109 = vlaneseq
    %v2110 = vshrl.u32 %v2109, 7
    %v2111 = vsub.s32 0, %v2110
    %v2112 = vrot.slane %v2108, %v2111
    %v2117 = vunpack.c.l.b16 %v2103
    %v2118 = vunpack.c.l.b16 %v2104
    %v2119 = vunpack.c.l.b16 %v2105
    %v2120 = vunpack.c.l.b16 %v2106
    %v2121 = vpack.c.b16 %v2118, %v2117
    %v2122 = vpack.c.b16 %v2120, %v2119
    %v2126 = vsel %vm228, %v2107, 0
    %2128 = vmatprep.subr.bf16.mxu0 0
    %2129 = vmatpush1.bf16.msra.mxu0 %v2121
    %2130 = vmatprep.subr.bf16.mxu0 0
    %2131 = vmatpush1.bf16.msra.mxu0 %v2122
    %2132 = vmatprep.subr.bf16.mxu0 0
    %2133 = vmatpush1.bf16.msra.mxu0 0
    %2134 = vmatprep.subr.bf16.mxu0 0
    %2135 = vmatpush1.bf16.msra.mxu0 0
    %2136 = vmatprep.subr.bf16.mxu0 0
    %2137 = vmatpush1.bf16.msra.mxu0 0
    %2138 = vmatprep.subr.bf16.mxu0 0
    %2139 = vmatpush1.bf16.msra.mxu0 0
    %2140 = vmatprep.subr.bf16.mxu0 0
    %2141 = vmatpush1.bf16.msra.mxu0 0
    %2142 = vmatprep.subr.bf16.mxu0 0
    %2143 = vmatpush1.bf16.msra.mxu0 0
    %2144 = vmatprep.subr.bf16.mxu0 0
    %2145 = vmatpush1.bf16.msra.mxu0 0
    %2146 = vmatprep.subr.bf16.mxu0 0
    %2147 = vmatpush1.bf16.msra.mxu0 0
    %2148 = vmatprep.subr.bf16.mxu0 0
    %2149 = vmatpush1.bf16.msra.mxu0 0
    %2150 = vmatprep.subr.bf16.mxu0 0
    %2151 = vmatpush1.bf16.msra.mxu0 0
    %2152 = vmatprep.subr.bf16.mxu0 0
    %2153 = vmatpush1.bf16.msra.mxu0 0
    %2154 = vmatprep.subr.bf16.mxu0 0
    %2155 = vmatpush1.bf16.msra.mxu0 0
    %2156 = vmatprep.subr.bf16.mxu0 0
    %2157 = vmatpush1.bf16.msra.mxu0 0
    %2158 = vmatprep.subr.bf16.mxu0 0
    %2159 = vmatpush1.bf16.msra.mxu0 0
    %2160 = vmatprep.mubr.bf16.mxu0 0
    %2161 = vmatmul.mubr.bf16.gmra.mrb[0].mxu0 %v2126
    %v2162 = vpop.f32.mrb[0].mxu0
    %v2163 = vadd.f32 %v2112, %v2162
    %v2164 = vpop.f32.mrb[0].mxu0
    %v2165 = vpop.f32.mrb[0].mxu0
    %v2166 = vpop.f32.mrb[0].mxu0
    %2167 = vdwg.mxu0
    %v2168 = vmax.f32 %v2163, 0.0
    %v2169 = vld [vmem:[#allocation2 + $0x11] sm:$0x1]
    %v2170 = vld [vmem:[#allocation2 + $0x12] sm:$0x1]
    %vm2171 = vcmask 259072
    %v2172 = vsel %vm2171, %v2168, 0.0
    %2173 = vadd.xlane.f32.xlu0 %v2172
    %v2174 = vpop.xlane.xlu0 %2173
    %v2175 = vmul.f32 %v2174, %v859
    %v2176 = vsub.f32 %v2168, %v2175
    %v2177 = vmul.f32 %v2176, %v2176
    %v2178 = vsel %vm2171, %v2177, 0.0
    %2179 = vadd.xlane.f32.xlu0 %v2178
    %v2180 = vpop.xlane.xlu0 %2179
    %v2181 = vmul.f32 %v2180, %v859
    %v2182 = vadd.f32 %v2181, 1e-05
    %v2183 = vrsqrt.pop %v2182
    %v2184 = vmul.f32 %v2176, %v2183
    %v2185 = vlaneseq
    %v2186 = vshrl.u32 %v2185, 7
    %v2187 = vsub.s32 0, %v2186
    %v2188 = vrot.slane %v2169, %v2187
    %v2189 = vmul.f32 %v2184, %v2188
    %v2190 = vlaneseq
    %v2191 = vshrl.u32 %v2190, 7
    %v2192 = vsub.s32 0, %v2191
    %v2193 = vrot.slane %v2170, %v2192
    %v2194 = vadd.f32 %v2189, %v2193
    %v2195 = vld [vmem:[%s1 + $0xb0] sm:$0xf]
    %v2196 = vld [vmem:[%s1 + $0xb4] sm:$0xf]
    %v2197 = vld [vmem:[%s1 + $0xb8] sm:$0xf]
    %v2198 = vld [vmem:[%s1 + $0xbc] sm:$0xf]
    %v2199 = vpack.c.bf16 %v2194, %v2194
    %v2200 = vld [vmem:[#allocation2 + $0x13] sm:$0x1]
    %v2201 = vlaneseq
    %v2202 = vshrl.u32 %v2201, 7
    %v2203 = vsub.s32 0, %v2202
    %v2204 = vrot.slane %v2200, %v2203
    %v2209 = vunpack.c.l.b16 %v2195
    %v2210 = vunpack.c.l.b16 %v2196
    %v2211 = vunpack.c.l.b16 %v2197
    %v2212 = vunpack.c.l.b16 %v2198
    %v2213 = vpack.c.b16 %v2210, %v2209
    %v2214 = vpack.c.b16 %v2212, %v2211
    %v2218 = vsel %vm228, %v2199, 0
    %2220 = vmatprep.subr.bf16.mxu0 0
    %2221 = vmatpush1.bf16.msra.mxu0 %v2213
    %2222 = vmatprep.subr.bf16.mxu0 0
    %2223 = vmatpush1.bf16.msra.mxu0 %v2214
    %2224 = vmatprep.subr.bf16.mxu0 0
    %2225 = vmatpush1.bf16.msra.mxu0 0
    %2226 = vmatprep.subr.bf16.mxu0 0
    %2227 = vmatpush1.bf16.msra.mxu0 0
    %2228 = vmatprep.subr.bf16.mxu0 0
    %2229 = vmatpush1.bf16.msra.mxu0 0
    %2230 = vmatprep.subr.bf16.mxu0 0
    %2231 = vmatpush1.bf16.msra.mxu0 0
    %2232 = vmatprep.subr.bf16.mxu0 0
    %2233 = vmatpush1.bf16.msra.mxu0 0
    %2234 = vmatprep.subr.bf16.mxu0 0
    %2235 = vmatpush1.bf16.msra.mxu0 0
    %2236 = vmatprep.subr.bf16.mxu0 0
    %2237 = vmatpush1.bf16.msra.mxu0 0
    %2238 = vmatprep.subr.bf16.mxu0 0
    %2239 = vmatpush1.bf16.msra.mxu0 0
    %2240 = vmatprep.subr.bf16.mxu0 0
    %2241 = vmatpush1.bf16.msra.mxu0 0
    %2242 = vmatprep.subr.bf16.mxu0 0
    %2243 = vmatpush1.bf16.msra.mxu0 0
    %2244 = vmatprep.subr.bf16.mxu0 0
    %2245 = vmatpush1.bf16.msra.mxu0 0
    %2246 = vmatprep.subr.bf16.mxu0 0
    %2247 = vmatpush1.bf16.msra.mxu0 0
    %2248 = vmatprep.subr.bf16.mxu0 0
    %2249 = vmatpush1.bf16.msra.mxu0 0
    %2250 = vmatprep.subr.bf16.mxu0 0
    %2251 = vmatpush1.bf16.msra.mxu0 0
    %2252 = vmatprep.mubr.bf16.mxu0 0
    %2253 = vmatmul.mubr.bf16.gmra.mrb[0].mxu0 %v2218
    %v2254 = vpop.f32.mrb[0].mxu0
    %v2255 = vadd.f32 %v2204, %v2254
    %v2256 = vpop.f32.mrb[0].mxu0
    %v2257 = vpop.f32.mrb[0].mxu0
    %v2258 = vpop.f32.mrb[0].mxu0
    %2259 = vdwg.mxu0
    %2260 = vst [vmem:[%s3 + $0x10] sm:$0x3f] %v2255
    // Predicated region
    $region18: #{bert_forward.1} parent=1 // pred_check
      _
    $region19: #{bert_forward.1} parent=1 // pred_check_branch
      %2262 = sbr.rel (0) target = $region21
    $region20: #{bert_forward.1} parent=1 // pred_region
      _
    $region21: #{bert_forward.1} parent=1 // pred_fallthru
      _
    // Predicated region
    $region22: #{bert_forward.1} parent=1 // pred_check
      _
    $region23: #{bert_forward.1} parent=1 // pred_check_branch
      %2264 = sbr.rel (0) target = $region25
    $region24: #{bert_forward.1} parent=1 // pred_region
      _
    $region25: #{bert_forward.1} parent=1 // pred_fallthru
      _
    %2265 = vsyncpa [#allocation3], 1

</llo_original>
